<compile_context>
chip_gen: v7x
topology: tpu7x:2x2x1
jax: 0.10.0
libtpu: 0.0.40
codegen_flags: <defaults>
</compile_context>

<pallas_src>
import jax
import jax.numpy as jnp
from jax.experimental import pallas as pl
from jax.experimental.pallas import tpu as pltpu


def dqn_kernel(x_ref, w1_ref, b1_ref, w2_ref, b2_ref,
               w3_ref, b3_ref, w4_ref, b4_ref, o_ref):
    # fc1 + relu   (bf16 MXU operands, f32 accumulation, f32 epilogue)
    h = jnp.dot(x_ref[...].astype(jnp.bfloat16), w1_ref[...],
                preferred_element_type=jnp.float32) + b1_ref[...]
    h = jnp.maximum(h, 0.0)
    # fc2 + relu
    h = jnp.dot(h.astype(jnp.bfloat16), w2_ref[...],
                preferred_element_type=jnp.float32) + b2_ref[...]
    h = jnp.maximum(h, 0.0)
    # fc3 + relu
    h = jnp.dot(h.astype(jnp.bfloat16), w3_ref[...],
                preferred_element_type=jnp.float32) + b3_ref[...]
    h = jnp.maximum(h, 0.0)
    # fc4 (no activation) -- narrow output, stored directly (masked lane store)
    out = jnp.dot(h.astype(jnp.bfloat16), w4_ref[...],
                  preferred_element_type=jnp.float32) + b4_ref[...]
    o_ref[...] = out.astype(o_ref.dtype)


def _round_up(v, m):
    return ((v + m - 1) // m) * m


def _num_tensorcores():
    """2 on v7x (dual TensorCore), else 1. Conservative fallback: 1."""
    try:
        kind = jax.devices()[0].device_kind.lower()
        return 2 if "7" in kind else 1
    except Exception:
        return 1


def prepare_params(params):
    """One-time conversion to the kernel-ready layout (do NOT call per forward).

    Input: w1..w4 as (in, out) f32, b1..b4 as (1, out) f32.
    Output: weights in bf16 (MXU operands), biases in f32 (added to f32 accumulator).
    """
    prepped = {}
    for i in range(1, 5):
        prepped[f"w{i}"] = params[f"w{i}"].astype(jnp.bfloat16)
        prepped[f"b{i}"] = params[f"b{i}"].astype(jnp.float32)
    return prepped


def dqn_forward(x, prepped, *, tb_max=2048, num_tiles=None):
    """x: (B, in_features) f32. prepped: output of prepare_params()."""
    B, in_features = x.shape
    out_features = prepped["w4"].shape[1]

    # Adaptive tiling: one tile on single-TC chips, one tile per TensorCore on v7x
    # (only if each tile gets a meaningful amount of work).
    if num_tiles is None:
        num_tiles = _num_tensorcores()
    if B < 256:
        num_tiles = 1
    tb = min(tb_max, _round_up(pl.cdiv(B, num_tiles), 8))
    num_tiles = pl.cdiv(B, tb)
    b_pad = num_tiles * tb
    if b_pad != B:
        x = jnp.pad(x, ((0, b_pad - B), (0, 0)))

    w1, b1 = prepped["w1"], prepped["b1"]
    w2, b2 = prepped["w2"], prepped["b2"]
    w3, b3 = prepped["w3"], prepped["b3"]
    w4, b4 = prepped["w4"], prepped["b4"]

    # Explicit specs: x / out tiled along batch; weights & biases VMEM-resident.
    in_specs = [
        pl.BlockSpec((tb, in_features), lambda i: (i, 0)),
        pl.BlockSpec(w1.shape, lambda i: (0, 0)),
        pl.BlockSpec(b1.shape, lambda i: (0, 0)),
        pl.BlockSpec(w2.shape, lambda i: (0, 0)),
        pl.BlockSpec(b2.shape, lambda i: (0, 0)),
        pl.BlockSpec(w3.shape, lambda i: (0, 0)),
        pl.BlockSpec(b3.shape, lambda i: (0, 0)),
        pl.BlockSpec(w4.shape, lambda i: (0, 0)),
        pl.BlockSpec(b4.shape, lambda i: (0, 0)),
    ]
    out_spec = pl.BlockSpec((tb, out_features), lambda i: (i, 0))

    hidden = w1.shape[1]
    flops_per_row = 2 * (in_features * hidden + hidden * (hidden // 2)
                         + (hidden // 2) * (hidden // 4)
                         + (hidden // 4) * out_features)
    param_bytes = sum(int(prepped[k].size) * prepped[k].dtype.itemsize for k in prepped)
    cost = pl.CostEstimate(
        flops=b_pad * flops_per_row,
        transcendentals=0,
        bytes_accessed=b_pad * in_features * 4 + param_bytes + b_pad * out_features * 4,
    )

    out = pl.pallas_call(
        dqn_kernel,
        out_shape=jax.ShapeDtypeStruct((b_pad, out_features), jnp.float32),
        grid=(num_tiles,),
        in_specs=in_specs,
        out_specs=out_spec,
        compiler_params=pltpu.CompilerParams(
            dimension_semantics=("parallel",),
        ),
        cost_estimate=cost,
    )(x, w1, b1, w2, b2, w3, b3, w4, b4)

    return out[:B] if b_pad != B else out


def init_params(key, in_features, out_features, hidden=128):
    """Deterministic init matching the DQN layer shapes (PyTorch-style uniform)."""
    dims = [(in_features, hidden),
            (hidden, hidden // 2),
            (hidden // 2, hidden // 4),
            (hidden // 4, out_features)]
    params = {}
    for i, (din, dout) in enumerate(dims, start=1):
        key, kw, kb = jax.random.split(key, 3)
        bound = 1.0 / jnp.sqrt(din)
        # stored as (in, out) so the kernel does x @ W
        params[f"w{i}"] = jax.random.uniform(kw, (din, dout), jnp.float32, -bound, bound)
        params[f"b{i}"] = jax.random.uniform(kb, (1, dout), jnp.float32, -bound, bound)
    return params


def reference_forward(x, params):
    """Pure-JAX reference with the same bf16-matmul / f32-accumulate recipe."""
    def lin(h, w, b):
        return jnp.dot(h.astype(jnp.bfloat16), w.astype(jnp.bfloat16),
                       preferred_element_type=jnp.float32) + b
    h = jnp.maximum(lin(x, params["w1"], params["b1"]), 0.0)
    h = jnp.maximum(lin(h, params["w2"], params["b2"]), 0.0)
    h = jnp.maximum(lin(h, params["w3"], params["b3"]), 0.0)
    return lin(h, params["w4"], params["b4"])


if __name__ == "__main__":
    key = jax.random.PRNGKey(0)
    # Batched inference: 512 states per call.
    B, in_features, out_features, hidden = 512, 16, 4, 128

    kx, kp = jax.random.split(key)
    x = jax.random.normal(kx, (B, in_features), jnp.float32)
    params = init_params(kp, in_features, out_features, hidden)

    # One-time param conversion (hoisted out of the per-call path).
    prepped = prepare_params(params)

    out = dqn_forward(x, prepped)
    out = jax.block_until_ready(out)

    ref = reference_forward(x, params)
    assert out.shape == (B, out_features)
    assert jnp.allclose(out, ref, atol=1e-2, rtol=1e-2), "mismatch vs. pure-JAX reference"

    # Also exercise a small, non-multiple-of-8 batch (typical action selection).
    x_small = jax.random.normal(kx, (13, in_features), jnp.float32)
    out_small = jax.block_until_ready(dqn_forward(x_small, prepped))
    ref_small = reference_forward(x_small, params)
    assert out_small.shape == (13, out_features)
    assert jnp.allclose(out_small, ref_small, atol=1e-2, rtol=1e-2)

    print("KERNEL_OK")
</pallas_src>

<mosaic_0001>
module attributes {stable_mosaic.version = 11 : i64} {
  func.func @dqn_kernel(%arg0: i32, %arg1: memref<512x16xf32, #tpu.memory_space<vmem>>, %arg2: memref<16x128xbf16, #tpu.memory_space<vmem>>, %arg3: memref<1x128xf32, #tpu.memory_space<vmem>>, %arg4: memref<128x64xbf16, #tpu.memory_space<vmem>>, %arg5: memref<1x64xf32, #tpu.memory_space<vmem>>, %arg6: memref<64x32xbf16, #tpu.memory_space<vmem>>, %arg7: memref<1x32xf32, #tpu.memory_space<vmem>>, %arg8: memref<32x4xbf16, #tpu.memory_space<vmem>>, %arg9: memref<1x4xf32, #tpu.memory_space<vmem>>, %arg10: memref<512x4xf32, #tpu.memory_space<vmem>>) attributes {dimension_semantics = [#tpu.dimension_semantics<parallel>], iteration_bounds = array<i64: 1>, scalar_prefetch = 0 : i64, scratch_operands = 0 : i64, tpu.core_type = #tpu.core_type<tc>, window_params = [{transform_indices = @transform_0, window_bounds = array<i64: 512, 16>}, {pipeline_mode = #tpu.pipeline_mode<synchronous>, transform_indices = @transform_1, window_bounds = array<i64: 16, 128>}, {pipeline_mode = #tpu.pipeline_mode<synchronous>, transform_indices = @transform_2, window_bounds = array<i64: 1, 128>}, {pipeline_mode = #tpu.pipeline_mode<synchronous>, transform_indices = @transform_3, window_bounds = array<i64: 128, 64>}, {pipeline_mode = #tpu.pipeline_mode<synchronous>, transform_indices = @transform_4, window_bounds = array<i64: 1, 64>}, {pipeline_mode = #tpu.pipeline_mode<synchronous>, transform_indices = @transform_5, window_bounds = array<i64: 64, 32>}, {pipeline_mode = #tpu.pipeline_mode<synchronous>, transform_indices = @transform_6, window_bounds = array<i64: 1, 32>}, {pipeline_mode = #tpu.pipeline_mode<synchronous>, transform_indices = @transform_7, window_bounds = array<i64: 32, 4>}, {pipeline_mode = #tpu.pipeline_mode<synchronous>, transform_indices = @transform_8, window_bounds = array<i64: 1, 4>}, {transform_indices = @transform_9, window_bounds = array<i64: 512, 4>}]} {
    %c0 = arith.constant 0 : index
    %c0_0 = arith.constant 0 : index
    %0 = vector.load %arg1[%c0, %c0_0] : memref<512x16xf32, #tpu.memory_space<vmem>>, vector<512x16xf32>
    %1 = arith.truncf %0 : vector<512x16xf32> to vector<512x16xbf16>
    %c0_1 = arith.constant 0 : index
    %c0_2 = arith.constant 0 : index
    %2 = vector.load %arg2[%c0_1, %c0_2] : memref<16x128xbf16, #tpu.memory_space<vmem>>, vector<16x128xbf16>
    %cst = arith.constant dense<0.000000e+00> : vector<512x128xf32>
    %3 = tpu.matmul %1, %2, %cst {dimension_numbers = #tpu.dot_dimension_numbers<[1], [0], [0], [1], [0, 0, 1, 1], [], []>} : vector<512x16xbf16>, vector<16x128xbf16>, vector<512x128xf32> -> vector<512x128xf32>
    %c0_3 = arith.constant 0 : index
    %c0_4 = arith.constant 0 : index
    %4 = vector.load %arg3[%c0_3, %c0_4] : memref<1x128xf32, #tpu.memory_space<vmem>>, vector<1x128xf32>
    %5 = vector.broadcast %4 : vector<1x128xf32> to vector<512x128xf32>
    %6 = arith.addf %3, %5 : vector<512x128xf32>
    %cst_5 = arith.constant 0.000000e+00 : f32
    %7 = vector.broadcast %cst_5 : f32 to vector<512x128xf32>
    %8 = arith.maximumf %6, %7 : vector<512x128xf32>
    %9 = arith.truncf %8 : vector<512x128xf32> to vector<512x128xbf16>
    %c0_6 = arith.constant 0 : index
    %c0_7 = arith.constant 0 : index
    %10 = vector.load %arg4[%c0_6, %c0_7] : memref<128x64xbf16, #tpu.memory_space<vmem>>, vector<128x64xbf16>
    %cst_8 = arith.constant dense<0.000000e+00> : vector<512x64xf32>
    %11 = tpu.matmul %9, %10, %cst_8 {dimension_numbers = #tpu.dot_dimension_numbers<[1], [0], [0], [1], [0, 0, 1, 1], [], []>} : vector<512x128xbf16>, vector<128x64xbf16>, vector<512x64xf32> -> vector<512x64xf32>
    %c0_9 = arith.constant 0 : index
    %c0_10 = arith.constant 0 : index
    %12 = vector.load %arg5[%c0_9, %c0_10] : memref<1x64xf32, #tpu.memory_space<vmem>>, vector<1x64xf32>
    %13 = vector.broadcast %12 : vector<1x64xf32> to vector<512x64xf32>
    %14 = arith.addf %11, %13 : vector<512x64xf32>
    %cst_11 = arith.constant 0.000000e+00 : f32
    %15 = vector.broadcast %cst_11 : f32 to vector<512x64xf32>
    %16 = arith.maximumf %14, %15 : vector<512x64xf32>
    %17 = arith.truncf %16 : vector<512x64xf32> to vector<512x64xbf16>
    %c0_12 = arith.constant 0 : index
    %c0_13 = arith.constant 0 : index
    %18 = vector.load %arg6[%c0_12, %c0_13] : memref<64x32xbf16, #tpu.memory_space<vmem>>, vector<64x32xbf16>
    %cst_14 = arith.constant dense<0.000000e+00> : vector<512x32xf32>
    %19 = tpu.matmul %17, %18, %cst_14 {dimension_numbers = #tpu.dot_dimension_numbers<[1], [0], [0], [1], [0, 0, 1, 1], [], []>} : vector<512x64xbf16>, vector<64x32xbf16>, vector<512x32xf32> -> vector<512x32xf32>
    %c0_15 = arith.constant 0 : index
    %c0_16 = arith.constant 0 : index
    %20 = vector.load %arg7[%c0_15, %c0_16] : memref<1x32xf32, #tpu.memory_space<vmem>>, vector<1x32xf32>
    %21 = vector.broadcast %20 : vector<1x32xf32> to vector<512x32xf32>
    %22 = arith.addf %19, %21 : vector<512x32xf32>
    %cst_17 = arith.constant 0.000000e+00 : f32
    %23 = vector.broadcast %cst_17 : f32 to vector<512x32xf32>
    %24 = arith.maximumf %22, %23 : vector<512x32xf32>
    %25 = arith.truncf %24 : vector<512x32xf32> to vector<512x32xbf16>
    %c0_18 = arith.constant 0 : index
    %c0_19 = arith.constant 0 : index
    %26 = vector.load %arg8[%c0_18, %c0_19] : memref<32x4xbf16, #tpu.memory_space<vmem>>, vector<32x4xbf16>
    %cst_20 = arith.constant dense<0.000000e+00> : vector<512x4xf32>
    %27 = tpu.matmul %25, %26, %cst_20 {dimension_numbers = #tpu.dot_dimension_numbers<[1], [0], [0], [1], [0, 0, 1, 1], [], []>} : vector<512x32xbf16>, vector<32x4xbf16>, vector<512x4xf32> -> vector<512x4xf32>
    %c0_21 = arith.constant 0 : index
    %c0_22 = arith.constant 0 : index
    %28 = vector.load %arg9[%c0_21, %c0_22] : memref<1x4xf32, #tpu.memory_space<vmem>>, vector<1x4xf32>
    %29 = vector.broadcast %28 : vector<1x4xf32> to vector<512x4xf32>
    %30 = arith.addf %27, %29 : vector<512x4xf32>
    %c0_23 = arith.constant 0 : index
    %c0_24 = arith.constant 0 : index
    %31 = vector.load %arg10[%c0_23, %c0_24] : memref<512x4xf32, #tpu.memory_space<vmem>>, vector<512x4xf32>
    tpu.vector_store %arg10[%c0_23, %c0_24], %30 {strides = array<i32>} : memref<512x4xf32, #tpu.memory_space<vmem>>, vector<512x4xf32>,
    return
  }
  func.func @transform_0(%arg0: i32) -> (i32, i32) {
    %c0_i32 = arith.constant 0 : i32
    %c0_i32_0 = arith.constant 0 : i32
    return %arg0, %c0_i32 : i32, i32
  }
  func.func @transform_1(%arg0: i32) -> (i32, i32) {
    %c0_i32 = arith.constant 0 : i32
    %c0_i32_0 = arith.constant 0 : i32
    %c0_i32_1 = arith.constant 0 : i32
    return %c0_i32, %c0_i32_0 : i32, i32
  }
  func.func @transform_2(%arg0: i32) -> (i32, i32) {
    %c0_i32 = arith.constant 0 : i32
    %c0_i32_0 = arith.constant 0 : i32
    %c0_i32_1 = arith.constant 0 : i32
    return %c0_i32, %c0_i32_0 : i32, i32
  }
  func.func @transform_3(%arg0: i32) -> (i32, i32) {
    %c0_i32 = arith.constant 0 : i32
    %c0_i32_0 = arith.constant 0 : i32
    %c0_i32_1 = arith.constant 0 : i32
    return %c0_i32, %c0_i32_0 : i32, i32
  }
  func.func @transform_4(%arg0: i32) -> (i32, i32) {
    %c0_i32 = arith.constant 0 : i32
    %c0_i32_0 = arith.constant 0 : i32
    %c0_i32_1 = arith.constant 0 : i32
    return %c0_i32, %c0_i32_0 : i32, i32
  }
  func.func @transform_5(%arg0: i32) -> (i32, i32) {
    %c0_i32 = arith.constant 0 : i32
    %c0_i32_0 = arith.constant 0 : i32
    %c0_i32_1 = arith.constant 0 : i32
    return %c0_i32, %c0_i32_0 : i32, i32
  }
  func.func @transform_6(%arg0: i32) -> (i32, i32) {
    %c0_i32 = arith.constant 0 : i32
    %c0_i32_0 = arith.constant 0 : i32
    %c0_i32_1 = arith.constant 0 : i32
    return %c0_i32, %c0_i32_0 : i32, i32
  }
  func.func @transform_7(%arg0: i32) -> (i32, i32) {
    %c0_i32 = arith.constant 0 : i32
    %c0_i32_0 = arith.constant 0 : i32
    %c0_i32_1 = arith.constant 0 : i32
    return %c0_i32, %c0_i32_0 : i32, i32
  }
  func.func @transform_8(%arg0: i32) -> (i32, i32) {
    %c0_i32 = arith.constant 0 : i32
    %c0_i32_0 = arith.constant 0 : i32
    %c0_i32_1 = arith.constant 0 : i32
    return %c0_i32, %c0_i32_0 : i32, i32
  }
  func.func @transform_9(%arg0: i32) -> (i32, i32) {
    %c0_i32 = arith.constant 0 : i32
    %c0_i32_0 = arith.constant 0 : i32
    return %arg0, %c0_i32 : i32, i32
  }
}

</mosaic_0001>

<llo_original>
// kernel: tpu_custom_call.1
$region0: #{tpu_custom_call.1}
  #allocation0 [shape = 'u32[]', space=smem, size = 0x4, offset = 0x4, fixed_abs, tag = 'smem constant byte address 0x4 - core index']
  #allocation1 [shape = 'u32[144,128]{1,0:T(1,128)}', space=vmem, size = 0x12000, scoped, tag = 'internal scratch']
  %s0 = inlined_call_operand.vmem [shape: f32[512,16], index: 0, kind: input, shape index: {}]
  %s1 = inlined_call_operand.vmem [shape: bf16[16,128], index: 1, kind: input, shape index: {}]
  %s2 = inlined_call_operand.vmem [shape: f32[1,128], index: 2, kind: input, shape index: {}]
  %s3 = inlined_call_operand.vmem [shape: bf16[128,64], index: 3, kind: input, shape index: {}]
  %s4 = inlined_call_operand.vmem [shape: f32[1,64], index: 4, kind: input, shape index: {}]
  %s5 = inlined_call_operand.vmem [shape: bf16[64,32], index: 5, kind: input, shape index: {}]
  %s6 = inlined_call_operand.vmem [shape: f32[1,32], index: 6, kind: input, shape index: {}]
  %s7 = inlined_call_operand.vmem [shape: bf16[32,4], index: 7, kind: input, shape index: {}]
  %s8 = inlined_call_operand.vmem [shape: f32[1,4], index: 8, kind: input, shape index: {}]
  %s9 = inlined_call_operand.vmem [shape: f32[512,4], index: 9, kind: output, shape index: {}]
  %s10 = sld [smem:[#allocation0]]
  $region46: #{tpu_custom_call.1} parent=0
    _
  %s12 = ssub.s32 1, %s10
  %s13 = scalar_select 0, %s12, %s10
  // Predicated region
  $region2: #{tpu_custom_call.1} parent=0 // pred_check
    _
  $region3: #{tpu_custom_call.1} parent=0 // pred_check_branch
    %15 = sbr.rel (0) target = $region5
  $region4: #{tpu_custom_call.1} parent=0 // pred_region
    _
  $region5: #{tpu_custom_call.1} parent=0 // pred_fallthru
    _
  // Predicated region
  $region6: #{tpu_custom_call.1} parent=0 // pred_check
    _
  $region7: #{tpu_custom_call.1} parent=0 // pred_check_branch
    %17 = sbr.rel (0) target = $region9
  $region8: #{tpu_custom_call.1} parent=0 // pred_region
    _
  $region9: #{tpu_custom_call.1} parent=0 // pred_fallthru
    _
  // Predicated region
  $region10: #{tpu_custom_call.1} parent=0 // pred_check
    _
  $region11: #{tpu_custom_call.1} parent=0 // pred_check_branch
    %19 = sbr.rel (0) target = $region13
  $region12: #{tpu_custom_call.1} parent=0 // pred_region
    _
  $region13: #{tpu_custom_call.1} parent=0 // pred_fallthru
    _
  // Predicated region
  $region14: #{tpu_custom_call.1} parent=0 // pred_check
    _
  $region15: #{tpu_custom_call.1} parent=0 // pred_check_branch
    %21 = sbr.rel (0) target = $region17
  $region16: #{tpu_custom_call.1} parent=0 // pred_region
    _
  $region17: #{tpu_custom_call.1} parent=0 // pred_fallthru
    _
  // Predicated region
  $region18: #{tpu_custom_call.1} parent=0 // pred_check
    _
  $region19: #{tpu_custom_call.1} parent=0 // pred_check_branch
    %23 = sbr.rel (0) target = $region21
  $region20: #{tpu_custom_call.1} parent=0 // pred_region
    _
  $region21: #{tpu_custom_call.1} parent=0 // pred_fallthru
    _
  // Predicated region
  $region22: #{tpu_custom_call.1} parent=0 // pred_check
    _
  $region23: #{tpu_custom_call.1} parent=0 // pred_check_branch
    %25 = sbr.rel (0) target = $region25
  $region24: #{tpu_custom_call.1} parent=0 // pred_region
    _
  $region25: #{tpu_custom_call.1} parent=0 // pred_fallthru
    _
  // Predicated region
  $region26: #{tpu_custom_call.1} parent=0 // pred_check
    _
  $region27: #{tpu_custom_call.1} parent=0 // pred_check_branch
    %27 = sbr.rel (0) target = $region29
  $region28: #{tpu_custom_call.1} parent=0 // pred_region
    _
  $region29: #{tpu_custom_call.1} parent=0 // pred_fallthru
    _
  // Predicated region
  $region30: #{tpu_custom_call.1} parent=0 // pred_check
    _
  $region31: #{tpu_custom_call.1} parent=0 // pred_check_branch
    %29 = sbr.rel (0) target = $region33
  $region32: #{tpu_custom_call.1} parent=0 // pred_region
    _
  $region33: #{tpu_custom_call.1} parent=0 // pred_fallthru
    _
  // Predicated region
  $region34: #{tpu_custom_call.1} parent=0 // pred_check
    _
  $region35: #{tpu_custom_call.1} parent=0 // pred_check_branch
    %31 = sbr.rel (0) target = $region37
  $region36: #{tpu_custom_call.1} parent=0 // pred_region
    _
  $region37: #{tpu_custom_call.1} parent=0 // pred_fallthru
    _
  %v33 = vld [vmem:[%s0] sm:$0xff]
  %v34 = vld [vmem:[%s0 + $0x8] sm:$0xff]
  %v35 = vld [vmem:[%s0 + $0x10] sm:$0xff]
  %v36 = vld [vmem:[%s0 + $0x18] sm:$0xff]
  %v37 = vld [vmem:[%s0 + $0x20] sm:$0xff]
  %v38 = vld [vmem:[%s0 + $0x28] sm:$0xff]
  %v39 = vld [vmem:[%s0 + $0x30] sm:$0xff]
  %v40 = vld [vmem:[%s0 + $0x38] sm:$0xff]
  %v41 = vld [vmem:[%s0 + $0x40] sm:$0xff]
  %v42 = vld [vmem:[%s0 + $0x48] sm:$0xff]
  %v43 = vld [vmem:[%s0 + $0x50] sm:$0xff]
  %v44 = vld [vmem:[%s0 + $0x58] sm:$0xff]
  %v45 = vld [vmem:[%s0 + $0x60] sm:$0xff]
  %v46 = vld [vmem:[%s0 + $0x68] sm:$0xff]
  %v47 = vld [vmem:[%s0 + $0x70] sm:$0xff]
  %v48 = vld [vmem:[%s0 + $0x78] sm:$0xff]
  %v49 = vld [vmem:[%s0 + $0x80] sm:$0xff]
  %v50 = vld [vmem:[%s0 + $0x88] sm:$0xff]
  %v51 = vld [vmem:[%s0 + $0x90] sm:$0xff]
  %v52 = vld [vmem:[%s0 + $0x98] sm:$0xff]
  %v53 = vld [vmem:[%s0 + $0xa0] sm:$0xff]
  %v54 = vld [vmem:[%s0 + $0xa8] sm:$0xff]
  %v55 = vld [vmem:[%s0 + $0xb0] sm:$0xff]
  %v56 = vld [vmem:[%s0 + $0xb8] sm:$0xff]
  %v57 = vld [vmem:[%s0 + $0xc0] sm:$0xff]
  %v58 = vld [vmem:[%s0 + $0xc8] sm:$0xff]
  %v59 = vld [vmem:[%s0 + $0xd0] sm:$0xff]
  %v60 = vld [vmem:[%s0 + $0xd8] sm:$0xff]
  %v61 = vld [vmem:[%s0 + $0xe0] sm:$0xff]
  %v62 = vld [vmem:[%s0 + $0xe8] sm:$0xff]
  %v63 = vld [vmem:[%s0 + $0xf0] sm:$0xff]
  %v64 = vld [vmem:[%s0 + $0xf8] sm:$0xff]
  %v65 = vld [vmem:[%s0 + $0x100] sm:$0xff]
  %v66 = vld [vmem:[%s0 + $0x108] sm:$0xff]
  %v67 = vld [vmem:[%s0 + $0x110] sm:$0xff]
  %v68 = vld [vmem:[%s0 + $0x118] sm:$0xff]
  %v69 = vld [vmem:[%s0 + $0x120] sm:$0xff]
  %v70 = vld [vmem:[%s0 + $0x128] sm:$0xff]
  %v71 = vld [vmem:[%s0 + $0x130] sm:$0xff]
  %v72 = vld [vmem:[%s0 + $0x138] sm:$0xff]
  %v73 = vld [vmem:[%s0 + $0x140] sm:$0xff]
  %v74 = vld [vmem:[%s0 + $0x148] sm:$0xff]
  %v75 = vld [vmem:[%s0 + $0x150] sm:$0xff]
  %v76 = vld [vmem:[%s0 + $0x158] sm:$0xff]
  %v77 = vld [vmem:[%s0 + $0x160] sm:$0xff]
  %v78 = vld [vmem:[%s0 + $0x168] sm:$0xff]
  %v79 = vld [vmem:[%s0 + $0x170] sm:$0xff]
  %v80 = vld [vmem:[%s0 + $0x178] sm:$0xff]
  %v81 = vld [vmem:[%s0 + $0x180] sm:$0xff]
  %v82 = vld [vmem:[%s0 + $0x188] sm:$0xff]
  %v83 = vld [vmem:[%s0 + $0x190] sm:$0xff]
  %v84 = vld [vmem:[%s0 + $0x198] sm:$0xff]
  %v85 = vld [vmem:[%s0 + $0x1a0] sm:$0xff]
  %v86 = vld [vmem:[%s0 + $0x1a8] sm:$0xff]
  %v87 = vld [vmem:[%s0 + $0x1b0] sm:$0xff]
  %v88 = vld [vmem:[%s0 + $0x1b8] sm:$0xff]
  %v89 = vld [vmem:[%s0 + $0x1c0] sm:$0xff]
  %v90 = vld [vmem:[%s0 + $0x1c8] sm:$0xff]
  %v91 = vld [vmem:[%s0 + $0x1d0] sm:$0xff]
  %v92 = vld [vmem:[%s0 + $0x1d8] sm:$0xff]
  %v93 = vld [vmem:[%s0 + $0x1e0] sm:$0xff]
  %v94 = vld [vmem:[%s0 + $0x1e8] sm:$0xff]
  %v95 = vld [vmem:[%s0 + $0x1f0] sm:$0xff]
  %v96 = vld [vmem:[%s0 + $0x1f8] sm:$0xff]
  %v97 = vpack.c.bf16 %v34, %v33
  %v98 = vpack.c.bf16 %v36, %v35
  %v99 = vpack.c.bf16 %v38, %v37
  %v100 = vpack.c.bf16 %v40, %v39
  %v101 = vpack.c.bf16 %v42, %v41
  %v102 = vpack.c.bf16 %v44, %v43
  %v103 = vpack.c.bf16 %v46, %v45
  %v104 = vpack.c.bf16 %v48, %v47
  %v105 = vpack.c.bf16 %v50, %v49
  %v106 = vpack.c.bf16 %v52, %v51
  %v107 = vpack.c.bf16 %v54, %v53
  %v108 = vpack.c.bf16 %v56, %v55
  %v109 = vpack.c.bf16 %v58, %v57
  %v110 = vpack.c.bf16 %v60, %v59
  %v111 = vpack.c.bf16 %v62, %v61
  %v112 = vpack.c.bf16 %v64, %v63
  %v113 = vpack.c.bf16 %v66, %v65
  %v114 = vpack.c.bf16 %v68, %v67
  %v115 = vpack.c.bf16 %v70, %v69
  %v116 = vpack.c.bf16 %v72, %v71
  %v117 = vpack.c.bf16 %v74, %v73
  %v118 = vpack.c.bf16 %v76, %v75
  %v119 = vpack.c.bf16 %v78, %v77
  %v120 = vpack.c.bf16 %v80, %v79
  %v121 = vpack.c.bf16 %v82, %v81
  %v122 = vpack.c.bf16 %v84, %v83
  %v123 = vpack.c.bf16 %v86, %v85
  %v124 = vpack.c.bf16 %v88, %v87
  %v125 = vpack.c.bf16 %v90, %v89
  %v126 = vpack.c.bf16 %v92, %v91
  %v127 = vpack.c.bf16 %v94, %v93
  %v128 = vpack.c.bf16 %v96, %v95
  %v129 = vld [vmem:[%s1] sm:$0xf]
  %v130 = vld [vmem:[%s1 + $0x4] sm:$0xf]
  %v131 = vld [vmem:[%s2] sm:$0x1]
  %v133 = vlaneseq
  %v134 = vshrl.u32 %v133, 7
  %v135 = vsub.s32 0, %v134
  %v136 = vrot.slane %v131, %v135
  %v140 = vunpack.c.l.b16 %v129
  %v141 = vunpack.c.l.b16 %v130
  %v142 = vpack.c.b16 %v141, %v140
  %vm144 = vcmask 130048
  %v146 = vsel %vm144, %v97, 0
  %v149 = vsel %vm144, %v98, 0
  %v152 = vsel %vm144, %v99, 0
  %v155 = vsel %vm144, %v100, 0
  %v158 = vsel %vm144, %v101, 0
  %v161 = vsel %vm144, %v102, 0
  %v164 = vsel %vm144, %v103, 0
  %v167 = vsel %vm144, %v104, 0
  %v170 = vsel %vm144, %v105, 0
  %v173 = vsel %vm144, %v106, 0
  %v176 = vsel %vm144, %v107, 0
  %v179 = vsel %vm144, %v108, 0
  %v182 = vsel %vm144, %v109, 0
  %v185 = vsel %vm144, %v110, 0
  %v188 = vsel %vm144, %v111, 0
  %v191 = vsel %vm144, %v112, 0
  %v194 = vsel %vm144, %v113, 0
  %v197 = vsel %vm144, %v114, 0
  %v200 = vsel %vm144, %v115, 0
  %v203 = vsel %vm144, %v116, 0
  %v206 = vsel %vm144, %v117, 0
  %v209 = vsel %vm144, %v118, 0
  %v212 = vsel %vm144, %v119, 0
  %v215 = vsel %vm144, %v120, 0
  %v218 = vsel %vm144, %v121, 0
  %v221 = vsel %vm144, %v122, 0
  %v224 = vsel %vm144, %v123, 0
  %v227 = vsel %vm144, %v124, 0
  %v230 = vsel %vm144, %v125, 0
  %v233 = vsel %vm144, %v126, 0
  %v236 = vsel %vm144, %v127, 0
  %v239 = vsel %vm144, %v128, 0
  %241 = vmatprep.subr.bf16.mxu0 0
  %242 = vmatpush1.bf16.msra.mxu0 %v142
  %243 = vmatprep.subr.bf16.mxu0 0
  %244 = vmatpush1.bf16.msra.mxu0 0
  %245 = vmatprep.subr.bf16.mxu0 0
  %246 = vmatpush1.bf16.msra.mxu0 0
  %247 = vmatprep.subr.bf16.mxu0 0
  %248 = vmatpush1.bf16.msra.mxu0 0
  %249 = vmatprep.subr.bf16.mxu0 0
  %250 = vmatpush1.bf16.msra.mxu0 0
  %251 = vmatprep.subr.bf16.mxu0 0
  %252 = vmatpush1.bf16.msra.mxu0 0
  %253 = vmatprep.subr.bf16.mxu0 0
  %254 = vmatpush1.bf16.msra.mxu0 0
  %255 = vmatprep.subr.bf16.mxu0 0
  %256 = vmatpush1.bf16.msra.mxu0 0
  %257 = vmatprep.subr.bf16.mxu0 0
  %258 = vmatpush1.bf16.msra.mxu0 0
  %259 = vmatprep.subr.bf16.mxu0 0
  %260 = vmatpush1.bf16.msra.mxu0 0
  %261 = vmatprep.subr.bf16.mxu0 0
  %262 = vmatpush1.bf16.msra.mxu0 0
  %263 = vmatprep.subr.bf16.mxu0 0
  %264 = vmatpush1.bf16.msra.mxu0 0
  %265 = vmatprep.subr.bf16.mxu0 0
  %266 = vmatpush1.bf16.msra.mxu0 0
  %267 = vmatprep.subr.bf16.mxu0 0
  %268 = vmatpush1.bf16.msra.mxu0 0
  %269 = vmatprep.subr.bf16.mxu0 0
  %270 = vmatpush1.bf16.msra.mxu0 0
  %271 = vmatprep.subr.bf16.mxu0 0
  %272 = vmatpush1.bf16.msra.mxu0 0
  %273 = vmatprep.mubr.bf16.mxu0 0
  %274 = vmatmul.mubr.bf16.gmra.mrb[0].mxu0 %v146
  %v275 = vpop.f32.mrb[0].mxu0
  %v276 = vadd.f32 %v136, %v275
  %v277 = vpop.f32.mrb[0].mxu0
  %v278 = vpop.f32.mrb[0].mxu0
  %v279 = vadd.f32 %v136, %v278
  %v280 = vpop.f32.mrb[0].mxu0
  %281 = vmatprep.mubr.bf16.mxu0 0
  %282 = vmatmul.mubr.bf16.gmra.mrb[0].mxu0 %v149
  %v283 = vpop.f32.mrb[0].mxu0
  %v284 = vadd.f32 %v136, %v283
  %v285 = vpop.f32.mrb[0].mxu0
  %v286 = vpop.f32.mrb[0].mxu0
  %v287 = vadd.f32 %v136, %v286
  %v288 = vpop.f32.mrb[0].mxu0
  %289 = vmatprep.mubr.bf16.mxu0 0
  %290 = vmatmul.mubr.bf16.gmra.mrb[0].mxu0 %v152
  %v291 = vpop.f32.mrb[0].mxu0
  %v292 = vadd.f32 %v136, %v291
  %v293 = vpop.f32.mrb[0].mxu0
  %v294 = vpop.f32.mrb[0].mxu0
  %v295 = vadd.f32 %v136, %v294
  %v296 = vpop.f32.mrb[0].mxu0
  %297 = vmatprep.mubr.bf16.mxu0 0
  %298 = vmatmul.mubr.bf16.gmra.mrb[0].mxu0 %v155
  %v299 = vpop.f32.mrb[0].mxu0
  %v300 = vadd.f32 %v136, %v299
  %v301 = vpop.f32.mrb[0].mxu0
  %v302 = vpop.f32.mrb[0].mxu0
  %v303 = vadd.f32 %v136, %v302
  %v304 = vpop.f32.mrb[0].mxu0
  %305 = vmatprep.mubr.bf16.mxu0 0
  %306 = vmatmul.mubr.bf16.gmra.mrb[0].mxu0 %v158
  %v307 = vpop.f32.mrb[0].mxu0
  %v308 = vadd.f32 %v136, %v307
  %v309 = vpop.f32.mrb[0].mxu0
  %v310 = vpop.f32.mrb[0].mxu0
  %v311 = vadd.f32 %v136, %v310
  %v312 = vpop.f32.mrb[0].mxu0
  %313 = vmatprep.mubr.bf16.mxu0 0
  %314 = vmatmul.mubr.bf16.gmra.mrb[0].mxu0 %v161
  %v315 = vpop.f32.mrb[0].mxu0
  %v316 = vadd.f32 %v136, %v315
  %v317 = vpop.f32.mrb[0].mxu0
  %v318 = vpop.f32.mrb[0].mxu0
  %v319 = vadd.f32 %v136, %v318
  %v320 = vpop.f32.mrb[0].mxu0
  %321 = vmatprep.mubr.bf16.mxu0 0
  %322 = vmatmul.mubr.bf16.gmra.mrb[0].mxu0 %v164
  %v323 = vpop.f32.mrb[0].mxu0
  %v324 = vadd.f32 %v136, %v323
  %v325 = vpop.f32.mrb[0].mxu0
  %v326 = vpop.f32.mrb[0].mxu0
  %v327 = vadd.f32 %v136, %v326
  %v328 = vpop.f32.mrb[0].mxu0
  %329 = vmatprep.mubr.bf16.mxu0 0
  %330 = vmatmul.mubr.bf16.gmra.mrb[0].mxu0 %v167
  %v331 = vpop.f32.mrb[0].mxu0
  %v332 = vadd.f32 %v136, %v331
  %v333 = vpop.f32.mrb[0].mxu0
  %v334 = vpop.f32.mrb[0].mxu0
  %v335 = vadd.f32 %v136, %v334
  %v336 = vpop.f32.mrb[0].mxu0
  %337 = vmatprep.mubr.bf16.mxu0 0
  %338 = vmatmul.mubr.bf16.gmra.mrb[0].mxu0 %v170
  %v339 = vpop.f32.mrb[0].mxu0
  %v340 = vadd.f32 %v136, %v339
  %v341 = vpop.f32.mrb[0].mxu0
  %v342 = vpop.f32.mrb[0].mxu0
  %v343 = vadd.f32 %v136, %v342
  %v344 = vpop.f32.mrb[0].mxu0
  %345 = vmatprep.mubr.bf16.mxu0 0
  %346 = vmatmul.mubr.bf16.gmra.mrb[0].mxu0 %v173
  %v347 = vpop.f32.mrb[0].mxu0
  %v348 = vadd.f32 %v136, %v347
  %v349 = vpop.f32.mrb[0].mxu0
  %v350 = vpop.f32.mrb[0].mxu0
  %v351 = vadd.f32 %v136, %v350
  %v352 = vpop.f32.mrb[0].mxu0
  %353 = vmatprep.mubr.bf16.mxu0 0
  %354 = vmatmul.mubr.bf16.gmra.mrb[0].mxu0 %v176
  %v355 = vpop.f32.mrb[0].mxu0
  %v356 = vadd.f32 %v136, %v355
  %v357 = vpop.f32.mrb[0].mxu0
  %v358 = vpop.f32.mrb[0].mxu0
  %v359 = vadd.f32 %v136, %v358
  %v360 = vpop.f32.mrb[0].mxu0
  %361 = vmatprep.mubr.bf16.mxu0 0
  %362 = vmatmul.mubr.bf16.gmra.mrb[0].mxu0 %v179
  %v363 = vpop.f32.mrb[0].mxu0
  %v364 = vadd.f32 %v136, %v363
  %v365 = vpop.f32.mrb[0].mxu0
  %v366 = vpop.f32.mrb[0].mxu0
  %v367 = vadd.f32 %v136, %v366
  %v368 = vpop.f32.mrb[0].mxu0
  %369 = vmatprep.mubr.bf16.mxu0 0
  %370 = vmatmul.mubr.bf16.gmra.mrb[0].mxu0 %v182
  %v371 = vpop.f32.mrb[0].mxu0
  %v372 = vadd.f32 %v136, %v371
  %v373 = vpop.f32.mrb[0].mxu0
  %v374 = vpop.f32.mrb[0].mxu0
  %v375 = vadd.f32 %v136, %v374
  %v376 = vpop.f32.mrb[0].mxu0
  %377 = vmatprep.mubr.bf16.mxu0 0
  %378 = vmatmul.mubr.bf16.gmra.mrb[0].mxu0 %v185
  %v379 = vpop.f32.mrb[0].mxu0
  %v380 = vadd.f32 %v136, %v379
  %v381 = vpop.f32.mrb[0].mxu0
  %v382 = vpop.f32.mrb[0].mxu0
  %v383 = vadd.f32 %v136, %v382
  %v384 = vpop.f32.mrb[0].mxu0
  %385 = vmatprep.mubr.bf16.mxu0 0
  %386 = vmatmul.mubr.bf16.gmra.mrb[0].mxu0 %v188
  %v387 = vpop.f32.mrb[0].mxu0
  %v388 = vadd.f32 %v136, %v387
  %v389 = vpop.f32.mrb[0].mxu0
  %v390 = vpop.f32.mrb[0].mxu0
  %v391 = vadd.f32 %v136, %v390
  %v392 = vpop.f32.mrb[0].mxu0
  %393 = vmatprep.mubr.bf16.mxu0 0
  %394 = vmatmul.mubr.bf16.gmra.mrb[0].mxu0 %v191
  %v395 = vpop.f32.mrb[0].mxu0
  %v396 = vadd.f32 %v136, %v395
  %v397 = vpop.f32.mrb[0].mxu0
  %v398 = vpop.f32.mrb[0].mxu0
  %v399 = vadd.f32 %v136, %v398
  %v400 = vpop.f32.mrb[0].mxu0
  %401 = vmatprep.mubr.bf16.mxu0 0
  %402 = vmatmul.mubr.bf16.gmra.mrb[0].mxu0 %v194
  %v403 = vpop.f32.mrb[0].mxu0
  %v404 = vadd.f32 %v136, %v403
  %v405 = vpop.f32.mrb[0].mxu0
  %v406 = vpop.f32.mrb[0].mxu0
  %v407 = vadd.f32 %v136, %v406
  %v408 = vpop.f32.mrb[0].mxu0
  %409 = vmatprep.mubr.bf16.mxu0 0
  %410 = vmatmul.mubr.bf16.gmra.mrb[0].mxu0 %v197
  %v411 = vpop.f32.mrb[0].mxu0
  %v412 = vadd.f32 %v136, %v411
  %v413 = vpop.f32.mrb[0].mxu0
  %v414 = vpop.f32.mrb[0].mxu0
  %v415 = vadd.f32 %v136, %v414
  %v416 = vpop.f32.mrb[0].mxu0
  %417 = vmatprep.mubr.bf16.mxu0 0
  %418 = vmatmul.mubr.bf16.gmra.mrb[0].mxu0 %v200
  %v419 = vpop.f32.mrb[0].mxu0
  %v420 = vadd.f32 %v136, %v419
  %v421 = vpop.f32.mrb[0].mxu0
  %v422 = vpop.f32.mrb[0].mxu0
  %v423 = vadd.f32 %v136, %v422
  %v424 = vpop.f32.mrb[0].mxu0
  %425 = vmatprep.mubr.bf16.mxu0 0
  %426 = vmatmul.mubr.bf16.gmra.mrb[0].mxu0 %v203
  %v427 = vpop.f32.mrb[0].mxu0
  %v428 = vadd.f32 %v136, %v427
  %v429 = vpop.f32.mrb[0].mxu0
  %v430 = vpop.f32.mrb[0].mxu0
  %v431 = vadd.f32 %v136, %v430
  %v432 = vpop.f32.mrb[0].mxu0
  %433 = vmatprep.mubr.bf16.mxu0 0
  %434 = vmatmul.mubr.bf16.gmra.mrb[0].mxu0 %v206
  %v435 = vpop.f32.mrb[0].mxu0
  %v436 = vadd.f32 %v136, %v435
  %v437 = vpop.f32.mrb[0].mxu0
  %v438 = vpop.f32.mrb[0].mxu0
  %v439 = vadd.f32 %v136, %v438
  %v440 = vpop.f32.mrb[0].mxu0
  %441 = vmatprep.mubr.bf16.mxu0 0
  %442 = vmatmul.mubr.bf16.gmra.mrb[0].mxu0 %v209
  %v443 = vpop.f32.mrb[0].mxu0
  %v444 = vadd.f32 %v136, %v443
  %v445 = vpop.f32.mrb[0].mxu0
  %v446 = vpop.f32.mrb[0].mxu0
  %v447 = vadd.f32 %v136, %v446
  %v448 = vpop.f32.mrb[0].mxu0
  %449 = vmatprep.mubr.bf16.mxu0 0
  %450 = vmatmul.mubr.bf16.gmra.mrb[0].mxu0 %v212
  %v451 = vpop.f32.mrb[0].mxu0
  %v452 = vadd.f32 %v136, %v451
  %v453 = vpop.f32.mrb[0].mxu0
  %v454 = vpop.f32.mrb[0].mxu0
  %v455 = vadd.f32 %v136, %v454
  %v456 = vpop.f32.mrb[0].mxu0
  %457 = vmatprep.mubr.bf16.mxu0 0
  %458 = vmatmul.mubr.bf16.gmra.mrb[0].mxu0 %v215
  %v459 = vpop.f32.mrb[0].mxu0
  %v460 = vadd.f32 %v136, %v459
  %v461 = vpop.f32.mrb[0].mxu0
  %v462 = vpop.f32.mrb[0].mxu0
  %v463 = vadd.f32 %v136, %v462
  %v464 = vpop.f32.mrb[0].mxu0
  %465 = vmatprep.mubr.bf16.mxu0 0
  %466 = vmatmul.mubr.bf16.gmra.mrb[0].mxu0 %v218
  %v467 = vpop.f32.mrb[0].mxu0
  %v468 = vadd.f32 %v136, %v467
  %v469 = vpop.f32.mrb[0].mxu0
  %v470 = vpop.f32.mrb[0].mxu0
  %v471 = vadd.f32 %v136, %v470
  %v472 = vpop.f32.mrb[0].mxu0
  %473 = vmatprep.mubr.bf16.mxu0 0
  %474 = vmatmul.mubr.bf16.gmra.mrb[0].mxu0 %v221
  %v475 = vpop.f32.mrb[0].mxu0
  %v476 = vadd.f32 %v136, %v475
  %v477 = vpop.f32.mrb[0].mxu0
  %v478 = vpop.f32.mrb[0].mxu0
  %v479 = vadd.f32 %v136, %v478
  %v480 = vpop.f32.mrb[0].mxu0
  %481 = vmatprep.mubr.bf16.mxu0 0
  %482 = vmatmul.mubr.bf16.gmra.mrb[0].mxu0 %v224
  %v483 = vpop.f32.mrb[0].mxu0
  %v484 = vadd.f32 %v136, %v483
  %v485 = vpop.f32.mrb[0].mxu0
  %v486 = vpop.f32.mrb[0].mxu0
  %v487 = vadd.f32 %v136, %v486
  %v488 = vpop.f32.mrb[0].mxu0
  %489 = vmatprep.mubr.bf16.mxu0 0
  %490 = vmatmul.mubr.bf16.gmra.mrb[0].mxu0 %v227
  %v491 = vpop.f32.mrb[0].mxu0
  %v492 = vadd.f32 %v136, %v491
  %v493 = vpop.f32.mrb[0].mxu0
  %v494 = vpop.f32.mrb[0].mxu0
  %v495 = vadd.f32 %v136, %v494
  %v496 = vpop.f32.mrb[0].mxu0
  %497 = vmatprep.mubr.bf16.mxu0 0
  %498 = vmatmul.mubr.bf16.gmra.mrb[0].mxu0 %v230
  %v499 = vpop.f32.mrb[0].mxu0
  %v500 = vadd.f32 %v136, %v499
  %v501 = vpop.f32.mrb[0].mxu0
  %v502 = vpop.f32.mrb[0].mxu0
  %v503 = vadd.f32 %v136, %v502
  %v504 = vpop.f32.mrb[0].mxu0
  %505 = vmatprep.mubr.bf16.mxu0 0
  %506 = vmatmul.mubr.bf16.gmra.mrb[0].mxu0 %v233
  %v507 = vpop.f32.mrb[0].mxu0
  %v508 = vadd.f32 %v136, %v507
  %v509 = vpop.f32.mrb[0].mxu0
  %v510 = vpop.f32.mrb[0].mxu0
  %v511 = vadd.f32 %v136, %v510
  %v512 = vpop.f32.mrb[0].mxu0
  %513 = vmatprep.mubr.bf16.mxu0 0
  %514 = vmatmul.mubr.bf16.gmra.mrb[0].mxu0 %v236
  %v515 = vpop.f32.mrb[0].mxu0
  %v516 = vadd.f32 %v136, %v515
  %v517 = vpop.f32.mrb[0].mxu0
  %v518 = vpop.f32.mrb[0].mxu0
  %v519 = vadd.f32 %v136, %v518
  %v520 = vpop.f32.mrb[0].mxu0
  %521 = vmatprep.mubr.bf16.mxu0 0
  %522 = vmatmul.mubr.bf16.gmra.mrb[0].mxu0 %v239
  %v523 = vpop.f32.mrb[0].mxu0
  %v524 = vadd.f32 %v136, %v523
  %v525 = vpop.f32.mrb[0].mxu0
  %v526 = vpop.f32.mrb[0].mxu0
  %v527 = vadd.f32 %v136, %v526
  %v528 = vpop.f32.mrb[0].mxu0
  %529 = vdwg.mxu0
  %v530 = vmax.f32 %v276, 0.0
  %v531 = vmax.f32 %v279, 0.0
  %v532 = vmax.f32 %v284, 0.0
  %v533 = vmax.f32 %v287, 0.0
  %v534 = vmax.f32 %v292, 0.0
  %v535 = vmax.f32 %v295, 0.0
  %v536 = vmax.f32 %v300, 0.0
  %v537 = vmax.f32 %v303, 0.0
  %v538 = vmax.f32 %v308, 0.0
  %v539 = vmax.f32 %v311, 0.0
  %v540 = vmax.f32 %v316, 0.0
  %v541 = vmax.f32 %v319, 0.0
  %v542 = vmax.f32 %v324, 0.0
  %v543 = vmax.f32 %v327, 0.0
  %v544 = vmax.f32 %v332, 0.0
  %v545 = vmax.f32 %v335, 0.0
  %v546 = vmax.f32 %v340, 0.0
  %v547 = vmax.f32 %v343, 0.0
  %v548 = vmax.f32 %v348, 0.0
  %v549 = vmax.f32 %v351, 0.0
  %v550 = vmax.f32 %v356, 0.0
  %v551 = vmax.f32 %v359, 0.0
  %v552 = vmax.f32 %v364, 0.0
  %v553 = vmax.f32 %v367, 0.0
  %v554 = vmax.f32 %v372, 0.0
  %v555 = vmax.f32 %v375, 0.0
  %v556 = vmax.f32 %v380, 0.0
  %v557 = vmax.f32 %v383, 0.0
  %v558 = vmax.f32 %v388, 0.0
  %v559 = vmax.f32 %v391, 0.0
  %v560 = vmax.f32 %v396, 0.0
  %v561 = vmax.f32 %v399, 0.0
  %v562 = vmax.f32 %v404, 0.0
  %v563 = vmax.f32 %v407, 0.0
  %v564 = vmax.f32 %v412, 0.0
  %v565 = vmax.f32 %v415, 0.0
  %v566 = vmax.f32 %v420, 0.0
  %v567 = vmax.f32 %v423, 0.0
  %v568 = vmax.f32 %v428, 0.0
  %v569 = vmax.f32 %v431, 0.0
  %v570 = vmax.f32 %v436, 0.0
  %v571 = vmax.f32 %v439, 0.0
  %v572 = vmax.f32 %v444, 0.0
  %v573 = vmax.f32 %v447, 0.0
  %v574 = vmax.f32 %v452, 0.0
  %v575 = vmax.f32 %v455, 0.0
  %v576 = vmax.f32 %v460, 0.0
  %v577 = vmax.f32 %v463, 0.0
  %v578 = vmax.f32 %v468, 0.0
  %v579 = vmax.f32 %v471, 0.0
  %v580 = vmax.f32 %v476, 0.0
  %v581 = vmax.f32 %v479, 0.0
  %v582 = vmax.f32 %v484, 0.0
  %v583 = vmax.f32 %v487, 0.0
  %v584 = vmax.f32 %v492, 0.0
  %v585 = vmax.f32 %v495, 0.0
  %v586 = vmax.f32 %v500, 0.0
  %v587 = vmax.f32 %v503, 0.0
  %v588 = vmax.f32 %v508, 0.0
  %v589 = vmax.f32 %v511, 0.0
  %v590 = vmax.f32 %v516, 0.0
  %v591 = vmax.f32 %v519, 0.0
  %v592 = vmax.f32 %v524, 0.0
  %v593 = vmax.f32 %v527, 0.0
  %v594 = vpack.c.bf16 %v531, %v530
  %v595 = vpack.c.bf16 %v533, %v532
  %v596 = vpack.c.bf16 %v535, %v534
  %v597 = vpack.c.bf16 %v537, %v536
  %v598 = vpack.c.bf16 %v539, %v538
  %v599 = vpack.c.bf16 %v541, %v540
  %v600 = vpack.c.bf16 %v543, %v542
  %v601 = vpack.c.bf16 %v545, %v544
  %v602 = vpack.c.bf16 %v547, %v546
  %v603 = vpack.c.bf16 %v549, %v548
  %v604 = vpack.c.bf16 %v551, %v550
  %v605 = vpack.c.bf16 %v553, %v552
  %v606 = vpack.c.bf16 %v555, %v554
  %v607 = vpack.c.bf16 %v557, %v556
  %v608 = vpack.c.bf16 %v559, %v558
  %v609 = vpack.c.bf16 %v561, %v560
  %v610 = vpack.c.bf16 %v563, %v562
  %v611 = vpack.c.bf16 %v565, %v564
  %v612 = vpack.c.bf16 %v567, %v566
  %v613 = vpack.c.bf16 %v569, %v568
  %v614 = vpack.c.bf16 %v571, %v570
  %v615 = vpack.c.bf16 %v573, %v572
  %v616 = vpack.c.bf16 %v575, %v574
  %v617 = vpack.c.bf16 %v577, %v576
  %v618 = vpack.c.bf16 %v579, %v578
  %v619 = vpack.c.bf16 %v581, %v580
  %v620 = vpack.c.bf16 %v583, %v582
  %v621 = vpack.c.bf16 %v585, %v584
  %v622 = vpack.c.bf16 %v587, %v586
  %v623 = vpack.c.bf16 %v589, %v588
  %v624 = vpack.c.bf16 %v591, %v590
  %v625 = vpack.c.bf16 %v593, %v592
  %v626 = vld [vmem:[%s3] sm:$0xf]
  %v627 = vld [vmem:[%s3 + $0x4] sm:$0xf]
  %v628 = vld [vmem:[%s3 + $0x8] sm:$0xf]
  %v629 = vld [vmem:[%s3 + $0xc] sm:$0xf]
  %v630 = vld [vmem:[%s3 + $0x10] sm:$0xf]
  %v631 = vld [vmem:[%s3 + $0x14] sm:$0xf]
  %v632 = vld [vmem:[%s3 + $0x18] sm:$0xf]
  %v633 = vld [vmem:[%s3 + $0x1c] sm:$0xf]
  %v634 = vld [vmem:[%s3 + $0x20] sm:$0xf]
  %v635 = vld [vmem:[%s3 + $0x24] sm:$0xf]
  %v636 = vld [vmem:[%s3 + $0x28] sm:$0xf]
  %v637 = vld [vmem:[%s3 + $0x2c] sm:$0xf]
  %v638 = vld [vmem:[%s3 + $0x30] sm:$0xf]
  %v639 = vld [vmem:[%s3 + $0x34] sm:$0xf]
  %v640 = vld [vmem:[%s3 + $0x38] sm:$0xf]
  %v641 = vld [vmem:[%s3 + $0x3c] sm:$0xf]
  %v642 = vld [vmem:[%s4] sm:$0x1]
  %v644 = vlaneseq
  %v645 = vshrl.u32 %v644, 7
  %v646 = vsub.s32 0, %v645
  %v647 = vrot.slane %v642, %v646
  %v665 = vunpack.c.l.b16 %v626
  %v666 = vunpack.c.l.b16 %v627
  %v667 = vunpack.c.l.b16 %v628
  %v668 = vunpack.c.l.b16 %v629
  %v669 = vunpack.c.l.b16 %v630
  %v670 = vunpack.c.l.b16 %v631
  %v671 = vunpack.c.l.b16 %v632
  %v672 = vunpack.c.l.b16 %v633
  %v673 = vunpack.c.l.b16 %v634
  %v674 = vunpack.c.l.b16 %v635
  %v675 = vunpack.c.l.b16 %v636
  %v676 = vunpack.c.l.b16 %v637
  %v677 = vunpack.c.l.b16 %v638
  %v678 = vunpack.c.l.b16 %v639
  %v679 = vunpack.c.l.b16 %v640
  %v680 = vunpack.c.l.b16 %v641
  %v681 = vpack.c.b16 %v666, %v665
  %v682 = vpack.c.b16 %v668, %v667
  %v683 = vpack.c.b16 %v670, %v669
  %v684 = vpack.c.b16 %v672, %v671
  %v685 = vpack.c.b16 %v674, %v673
  %v686 = vpack.c.b16 %v676, %v675
  %v687 = vpack.c.b16 %v678, %v677
  %v688 = vpack.c.b16 %v680, %v679
  %697 = vmatprep.subr.bf16.mxu0 0
  %698 = vmatpush1.bf16.msra.mxu0 %v681
  %699 = vmatprep.subr.bf16.mxu0 0
  %700 = vmatpush1.bf16.msra.mxu0 %v682
  %701 = vmatprep.subr.bf16.mxu0 0
  %702 = vmatpush1.bf16.msra.mxu0 %v683
  %703 = vmatprep.subr.bf16.mxu0 0
  %704 = vmatpush1.bf16.msra.mxu0 %v684
  %705 = vmatprep.subr.bf16.mxu0 0
  %706 = vmatpush1.bf16.msra.mxu0 %v685
  %707 = vmatprep.subr.bf16.mxu0 0
  %708 = vmatpush1.bf16.msra.mxu0 %v686
  %709 = vmatprep.subr.bf16.mxu0 0
  %710 = vmatpush1.bf16.msra.mxu0 %v687
  %711 = vmatprep.subr.bf16.mxu0 0
  %712 = vmatpush1.bf16.msra.mxu0 %v688
  %713 = vmatprep.subr.bf16.mxu0 0
  %714 = vmatpush1.bf16.msra.mxu0 0
  %715 = vmatprep.subr.bf16.mxu0 0
  %716 = vmatpush1.bf16.msra.mxu0 0
  %717 = vmatprep.subr.bf16.mxu0 0
  %718 = vmatpush1.bf16.msra.mxu0 0
  %719 = vmatprep.subr.bf16.mxu0 0
  %720 = vmatpush1.bf16.msra.mxu0 0
  %721 = vmatprep.subr.bf16.mxu0 0
  %722 = vmatpush1.bf16.msra.mxu0 0
  %723 = vmatprep.subr.bf16.mxu0 0
  %724 = vmatpush1.bf16.msra.mxu0 0
  %725 = vmatprep.subr.bf16.mxu0 0
  %726 = vmatpush1.bf16.msra.mxu0 0
  %727 = vmatprep.subr.bf16.mxu0 0
  %728 = vmatpush1.bf16.msra.mxu0 0
  %729 = vmatprep.mubr.bf16.mxu0 0
  %730 = vmatmul.mubr.bf16.gmra.mrb[0].mxu0 %v594
  %v731 = vpop.f32.mrb[0].mxu0
  %v732 = vadd.f32 %v647, %v731
  %v733 = vpop.f32.mrb[0].mxu0
  %v734 = vpop.f32.mrb[0].mxu0
  %v735 = vadd.f32 %v647, %v734
  %v736 = vpop.f32.mrb[0].mxu0
  %737 = vmatprep.mubr.bf16.mxu0 0
  %738 = vmatmul.mubr.bf16.gmra.mrb[0].mxu0 %v595
  %v739 = vpop.f32.mrb[0].mxu0
  %v740 = vadd.f32 %v647, %v739
  %v741 = vpop.f32.mrb[0].mxu0
  %v742 = vpop.f32.mrb[0].mxu0
  %v743 = vadd.f32 %v647, %v742
  %v744 = vpop.f32.mrb[0].mxu0
  %745 = vmatprep.mubr.bf16.mxu0 0
  %746 = vmatmul.mubr.bf16.gmra.mrb[0].mxu0 %v596
  %v747 = vpop.f32.mrb[0].mxu0
  %v748 = vadd.f32 %v647, %v747
  %v749 = vpop.f32.mrb[0].mxu0
  %v750 = vpop.f32.mrb[0].mxu0
  %v751 = vadd.f32 %v647, %v750
  %v752 = vpop.f32.mrb[0].mxu0
  %753 = vmatprep.mubr.bf16.mxu0 0
  %754 = vmatmul.mubr.bf16.gmra.mrb[0].mxu0 %v597
  %v755 = vpop.f32.mrb[0].mxu0
  %v756 = vadd.f32 %v647, %v755
  %v757 = vpop.f32.mrb[0].mxu0
  %v758 = vpop.f32.mrb[0].mxu0
  %v759 = vadd.f32 %v647, %v758
  %v760 = vpop.f32.mrb[0].mxu0
  %761 = vmatprep.mubr.bf16.mxu0 0
  %762 = vmatmul.mubr.bf16.gmra.mrb[0].mxu0 %v598
  %v763 = vpop.f32.mrb[0].mxu0
  %v764 = vadd.f32 %v647, %v763
  %v765 = vpop.f32.mrb[0].mxu0
  %v766 = vpop.f32.mrb[0].mxu0
  %v767 = vadd.f32 %v647, %v766
  %v768 = vpop.f32.mrb[0].mxu0
  %769 = vmatprep.mubr.bf16.mxu0 0
  %770 = vmatmul.mubr.bf16.gmra.mrb[0].mxu0 %v599
  %v771 = vpop.f32.mrb[0].mxu0
  %v772 = vadd.f32 %v647, %v771
  %v773 = vpop.f32.mrb[0].mxu0
  %v774 = vpop.f32.mrb[0].mxu0
  %v775 = vadd.f32 %v647, %v774
  %v776 = vpop.f32.mrb[0].mxu0
  %777 = vmatprep.mubr.bf16.mxu0 0
  %778 = vmatmul.mubr.bf16.gmra.mrb[0].mxu0 %v600
  %v779 = vpop.f32.mrb[0].mxu0
  %v780 = vadd.f32 %v647, %v779
  %v781 = vpop.f32.mrb[0].mxu0
  %v782 = vpop.f32.mrb[0].mxu0
  %v783 = vadd.f32 %v647, %v782
  %v784 = vpop.f32.mrb[0].mxu0
  %785 = vmatprep.mubr.bf16.mxu0 0
  %786 = vmatmul.mubr.bf16.gmra.mrb[0].mxu0 %v601
  %v787 = vpop.f32.mrb[0].mxu0
  %v788 = vadd.f32 %v647, %v787
  %v789 = vpop.f32.mrb[0].mxu0
  %v790 = vpop.f32.mrb[0].mxu0
  %v791 = vadd.f32 %v647, %v790
  %v792 = vpop.f32.mrb[0].mxu0
  %793 = vmatprep.mubr.bf16.mxu0 0
  %794 = vmatmul.mubr.bf16.gmra.mrb[0].mxu0 %v602
  %v795 = vpop.f32.mrb[0].mxu0
  %v796 = vadd.f32 %v647, %v795
  %v797 = vpop.f32.mrb[0].mxu0
  %v798 = vpop.f32.mrb[0].mxu0
  %v799 = vadd.f32 %v647, %v798
  %v800 = vpop.f32.mrb[0].mxu0
  %801 = vmatprep.mubr.bf16.mxu0 0
  %802 = vmatmul.mubr.bf16.gmra.mrb[0].mxu0 %v603
  %v803 = vpop.f32.mrb[0].mxu0
  %v804 = vadd.f32 %v647, %v803
  %v805 = vpop.f32.mrb[0].mxu0
  %v806 = vpop.f32.mrb[0].mxu0
  %v807 = vadd.f32 %v647, %v806
  %v808 = vpop.f32.mrb[0].mxu0
  %809 = vmatprep.mubr.bf16.mxu0 0
  %810 = vmatmul.mubr.bf16.gmra.mrb[0].mxu0 %v604
  %v811 = vpop.f32.mrb[0].mxu0
  %v812 = vadd.f32 %v647, %v811
  %v813 = vpop.f32.mrb[0].mxu0
  %v814 = vpop.f32.mrb[0].mxu0
  %v815 = vadd.f32 %v647, %v814
  %v816 = vpop.f32.mrb[0].mxu0
  %817 = vmatprep.mubr.bf16.mxu0 0
  %818 = vmatmul.mubr.bf16.gmra.mrb[0].mxu0 %v605
  %v819 = vpop.f32.mrb[0].mxu0
  %v820 = vadd.f32 %v647, %v819
  %v821 = vpop.f32.mrb[0].mxu0
  %v822 = vpop.f32.mrb[0].mxu0
  %v823 = vadd.f32 %v647, %v822
  %v824 = vpop.f32.mrb[0].mxu0
  %825 = vmatprep.mubr.bf16.mxu0 0
  %826 = vmatmul.mubr.bf16.gmra.mrb[0].mxu0 %v606
  %v827 = vpop.f32.mrb[0].mxu0
  %v828 = vadd.f32 %v647, %v827
  %v829 = vpop.f32.mrb[0].mxu0
  %v830 = vpop.f32.mrb[0].mxu0
  %v831 = vadd.f32 %v647, %v830
  %v832 = vpop.f32.mrb[0].mxu0
  %833 = vmatprep.mubr.bf16.mxu0 0
  %834 = vmatmul.mubr.bf16.gmra.mrb[0].mxu0 %v607
  %v835 = vpop.f32.mrb[0].mxu0
  %v836 = vadd.f32 %v647, %v835
  %v837 = vpop.f32.mrb[0].mxu0
  %v838 = vpop.f32.mrb[0].mxu0
  %v839 = vadd.f32 %v647, %v838
  %v840 = vpop.f32.mrb[0].mxu0
  %841 = vmatprep.mubr.bf16.mxu0 0
  %842 = vmatmul.mubr.bf16.gmra.mrb[0].mxu0 %v608
  %v843 = vpop.f32.mrb[0].mxu0
  %v844 = vadd.f32 %v647, %v843
  %v845 = vpop.f32.mrb[0].mxu0
  %v846 = vpop.f32.mrb[0].mxu0
  %v847 = vadd.f32 %v647, %v846
  %v848 = vpop.f32.mrb[0].mxu0
  %849 = vmatprep.mubr.bf16.mxu0 0
  %850 = vmatmul.mubr.bf16.gmra.mrb[0].mxu0 %v609
  %v851 = vpop.f32.mrb[0].mxu0
  %v852 = vadd.f32 %v647, %v851
  %v853 = vpop.f32.mrb[0].mxu0
  %v854 = vpop.f32.mrb[0].mxu0
  %v855 = vadd.f32 %v647, %v854
  %v856 = vpop.f32.mrb[0].mxu0
  %857 = vmatprep.mubr.bf16.mxu0 0
  %858 = vmatmul.mubr.bf16.gmra.mrb[0].mxu0 %v610
  %v859 = vpop.f32.mrb[0].mxu0
  %v860 = vadd.f32 %v647, %v859
  %v861 = vpop.f32.mrb[0].mxu0
  %v862 = vpop.f32.mrb[0].mxu0
  %v863 = vadd.f32 %v647, %v862
  %v864 = vpop.f32.mrb[0].mxu0
  %865 = vmatprep.mubr.bf16.mxu0 0
  %866 = vmatmul.mubr.bf16.gmra.mrb[0].mxu0 %v611
  %v867 = vpop.f32.mrb[0].mxu0
  %v868 = vadd.f32 %v647, %v867
  %v869 = vpop.f32.mrb[0].mxu0
  %v870 = vpop.f32.mrb[0].mxu0
  %v871 = vadd.f32 %v647, %v870
  %v872 = vpop.f32.mrb[0].mxu0
  %873 = vmatprep.mubr.bf16.mxu0 0
  %874 = vmatmul.mubr.bf16.gmra.mrb[0].mxu0 %v612
  %v875 = vpop.f32.mrb[0].mxu0
  %v876 = vadd.f32 %v647, %v875
  %v877 = vpop.f32.mrb[0].mxu0
  %v878 = vpop.f32.mrb[0].mxu0
  %v879 = vadd.f32 %v647, %v878
  %v880 = vpop.f32.mrb[0].mxu0
  %881 = vmatprep.mubr.bf16.mxu0 0
  %882 = vmatmul.mubr.bf16.gmra.mrb[0].mxu0 %v613
  %v883 = vpop.f32.mrb[0].mxu0
  %v884 = vadd.f32 %v647, %v883
  %v885 = vpop.f32.mrb[0].mxu0
  %v886 = vpop.f32.mrb[0].mxu0
  %v887 = vadd.f32 %v647, %v886
  %v888 = vpop.f32.mrb[0].mxu0
  %889 = vmatprep.mubr.bf16.mxu0 0
  %890 = vmatmul.mubr.bf16.gmra.mrb[0].mxu0 %v614
  %v891 = vpop.f32.mrb[0].mxu0
  %v892 = vadd.f32 %v647, %v891
  %v893 = vpop.f32.mrb[0].mxu0
  %v894 = vpop.f32.mrb[0].mxu0
  %v895 = vadd.f32 %v647, %v894
  %v896 = vpop.f32.mrb[0].mxu0
  %897 = vmatprep.mubr.bf16.mxu0 0
  %898 = vmatmul.mubr.bf16.gmra.mrb[0].mxu0 %v615
  %v899 = vpop.f32.mrb[0].mxu0
  %v900 = vadd.f32 %v647, %v899
  %v901 = vpop.f32.mrb[0].mxu0
  %v902 = vpop.f32.mrb[0].mxu0
  %v903 = vadd.f32 %v647, %v902
  %v904 = vpop.f32.mrb[0].mxu0
  %905 = vmatprep.mubr.bf16.mxu0 0
  %906 = vmatmul.mubr.bf16.gmra.mrb[0].mxu0 %v616
  %v907 = vpop.f32.mrb[0].mxu0
  %v908 = vadd.f32 %v647, %v907
  %v909 = vpop.f32.mrb[0].mxu0
  %v910 = vpop.f32.mrb[0].mxu0
  %v911 = vadd.f32 %v647, %v910
  %v912 = vpop.f32.mrb[0].mxu0
  %913 = vmatprep.mubr.bf16.mxu0 0
  %914 = vmatmul.mubr.bf16.gmra.mrb[0].mxu0 %v617
  %v915 = vpop.f32.mrb[0].mxu0
  %v916 = vadd.f32 %v647, %v915
  %v917 = vpop.f32.mrb[0].mxu0
  %v918 = vpop.f32.mrb[0].mxu0
  %v919 = vadd.f32 %v647, %v918
  %v920 = vpop.f32.mrb[0].mxu0
  %921 = vmatprep.mubr.bf16.mxu0 0
  %922 = vmatmul.mubr.bf16.gmra.mrb[0].mxu0 %v618
  %v923 = vpop.f32.mrb[0].mxu0
  %v924 = vadd.f32 %v647, %v923
  %v925 = vpop.f32.mrb[0].mxu0
  %v926 = vpop.f32.mrb[0].mxu0
  %v927 = vadd.f32 %v647, %v926
  %v928 = vpop.f32.mrb[0].mxu0
  %929 = vmatprep.mubr.bf16.mxu0 0
  %930 = vmatmul.mubr.bf16.gmra.mrb[0].mxu0 %v619
  %v931 = vpop.f32.mrb[0].mxu0
  %v932 = vadd.f32 %v647, %v931
  %v933 = vpop.f32.mrb[0].mxu0
  %v934 = vpop.f32.mrb[0].mxu0
  %v935 = vadd.f32 %v647, %v934
  %v936 = vpop.f32.mrb[0].mxu0
  %937 = vmatprep.mubr.bf16.mxu0 0
  %938 = vmatmul.mubr.bf16.gmra.mrb[0].mxu0 %v620
  %v939 = vpop.f32.mrb[0].mxu0
  %v940 = vadd.f32 %v647, %v939
  %v941 = vpop.f32.mrb[0].mxu0
  %v942 = vpop.f32.mrb[0].mxu0
  %v943 = vadd.f32 %v647, %v942
  %v944 = vpop.f32.mrb[0].mxu0
  %945 = vmatprep.mubr.bf16.mxu0 0
  %946 = vmatmul.mubr.bf16.gmra.mrb[0].mxu0 %v621
  %v947 = vpop.f32.mrb[0].mxu0
  %v948 = vadd.f32 %v647, %v947
  %v949 = vpop.f32.mrb[0].mxu0
  %v950 = vpop.f32.mrb[0].mxu0
  %v951 = vadd.f32 %v647, %v950
  %v952 = vpop.f32.mrb[0].mxu0
  %953 = vmatprep.mubr.bf16.mxu0 0
  %954 = vmatmul.mubr.bf16.gmra.mrb[0].mxu0 %v622
  %v955 = vpop.f32.mrb[0].mxu0
  %v956 = vadd.f32 %v647, %v955
  %v957 = vpop.f32.mrb[0].mxu0
  %v958 = vpop.f32.mrb[0].mxu0
  %v959 = vadd.f32 %v647, %v958
  %v960 = vpop.f32.mrb[0].mxu0
  %961 = vmatprep.mubr.bf16.mxu0 0
  %962 = vmatmul.mubr.bf16.gmra.mrb[0].mxu0 %v623
  %v963 = vpop.f32.mrb[0].mxu0
  %v964 = vadd.f32 %v647, %v963
  %v965 = vpop.f32.mrb[0].mxu0
  %v966 = vpop.f32.mrb[0].mxu0
  %v967 = vadd.f32 %v647, %v966
  %v968 = vpop.f32.mrb[0].mxu0
  %969 = vmatprep.mubr.bf16.mxu0 0
  %970 = vmatmul.mubr.bf16.gmra.mrb[0].mxu0 %v624
  %v971 = vpop.f32.mrb[0].mxu0
  %v972 = vadd.f32 %v647, %v971
  %v973 = vpop.f32.mrb[0].mxu0
  %v974 = vpop.f32.mrb[0].mxu0
  %v975 = vadd.f32 %v647, %v974
  %v976 = vpop.f32.mrb[0].mxu0
  %977 = vmatprep.mubr.bf16.mxu0 0
  %978 = vmatmul.mubr.bf16.gmra.mrb[0].mxu0 %v625
  %v979 = vpop.f32.mrb[0].mxu0
  %v980 = vadd.f32 %v647, %v979
  %v981 = vpop.f32.mrb[0].mxu0
  %v982 = vpop.f32.mrb[0].mxu0
  %v983 = vadd.f32 %v647, %v982
  %v984 = vpop.f32.mrb[0].mxu0
  %985 = vdwg.mxu0
  %v986 = vmax.f32 %v732, 0.0
  %v987 = vmax.f32 %v735, 0.0
  %v988 = vmax.f32 %v740, 0.0
  %v989 = vmax.f32 %v743, 0.0
  %v990 = vmax.f32 %v748, 0.0
  %v991 = vmax.f32 %v751, 0.0
  %v992 = vmax.f32 %v756, 0.0
  %v993 = vmax.f32 %v759, 0.0
  %v994 = vmax.f32 %v764, 0.0
  %v995 = vmax.f32 %v767, 0.0
  %v996 = vmax.f32 %v772, 0.0
  %v997 = vmax.f32 %v775, 0.0
  %v998 = vmax.f32 %v780, 0.0
  %v999 = vmax.f32 %v783, 0.0
  %v1000 = vmax.f32 %v788, 0.0
  %v1001 = vmax.f32 %v791, 0.0
  %v1002 = vmax.f32 %v796, 0.0
  %v1003 = vmax.f32 %v799, 0.0
  %v1004 = vmax.f32 %v804, 0.0
  %v1005 = vmax.f32 %v807, 0.0
  %v1006 = vmax.f32 %v812, 0.0
  %v1007 = vmax.f32 %v815, 0.0
  %v1008 = vmax.f32 %v820, 0.0
  %v1009 = vmax.f32 %v823, 0.0
  %v1010 = vmax.f32 %v828, 0.0
  %v1011 = vmax.f32 %v831, 0.0
  %v1012 = vmax.f32 %v836, 0.0
  %v1013 = vmax.f32 %v839, 0.0
  %v1014 = vmax.f32 %v844, 0.0
  %v1015 = vmax.f32 %v847, 0.0
  %v1016 = vmax.f32 %v852, 0.0
  %v1017 = vmax.f32 %v855, 0.0
  %v1018 = vmax.f32 %v860, 0.0
  %v1019 = vmax.f32 %v863, 0.0
  %v1020 = vmax.f32 %v868, 0.0
  %v1021 = vmax.f32 %v871, 0.0
  %v1022 = vmax.f32 %v876, 0.0
  %v1023 = vmax.f32 %v879, 0.0
  %v1024 = vmax.f32 %v884, 0.0
  %v1025 = vmax.f32 %v887, 0.0
  %v1026 = vmax.f32 %v892, 0.0
  %v1027 = vmax.f32 %v895, 0.0
  %v1028 = vmax.f32 %v900, 0.0
  %v1029 = vmax.f32 %v903, 0.0
  %v1030 = vmax.f32 %v908, 0.0
  %v1031 = vmax.f32 %v911, 0.0
  %v1032 = vmax.f32 %v916, 0.0
  %v1033 = vmax.f32 %v919, 0.0
  %v1034 = vmax.f32 %v924, 0.0
  %v1035 = vmax.f32 %v927, 0.0
  %v1036 = vmax.f32 %v932, 0.0
  %v1037 = vmax.f32 %v935, 0.0
  %v1038 = vmax.f32 %v940, 0.0
  %v1039 = vmax.f32 %v943, 0.0
  %v1040 = vmax.f32 %v948, 0.0
  %v1041 = vmax.f32 %v951, 0.0
  %v1042 = vmax.f32 %v956, 0.0
  %v1043 = vmax.f32 %v959, 0.0
  %v1044 = vmax.f32 %v964, 0.0
  %v1045 = vmax.f32 %v967, 0.0
  %v1046 = vmax.f32 %v972, 0.0
  %v1047 = vmax.f32 %v975, 0.0
  %v1048 = vmax.f32 %v980, 0.0
  %v1049 = vmax.f32 %v983, 0.0
  %v1050 = vpack.c.bf16 %v987, %v986
  %v1051 = vpack.c.bf16 %v989, %v988
  %v1052 = vpack.c.bf16 %v991, %v990
  %v1053 = vpack.c.bf16 %v993, %v992
  %v1054 = vpack.c.bf16 %v995, %v994
  %v1055 = vpack.c.bf16 %v997, %v996
  %v1056 = vpack.c.bf16 %v999, %v998
  %v1057 = vpack.c.bf16 %v1001, %v1000
  %v1058 = vpack.c.bf16 %v1003, %v1002
  %v1059 = vpack.c.bf16 %v1005, %v1004
  %v1060 = vpack.c.bf16 %v1007, %v1006
  %v1061 = vpack.c.bf16 %v1009, %v1008
  %v1062 = vpack.c.bf16 %v1011, %v1010
  %v1063 = vpack.c.bf16 %v1013, %v1012
  %v1064 = vpack.c.bf16 %v1015, %v1014
  %v1065 = vpack.c.bf16 %v1017, %v1016
  %v1066 = vpack.c.bf16 %v1019, %v1018
  %v1067 = vpack.c.bf16 %v1021, %v1020
  %v1068 = vpack.c.bf16 %v1023, %v1022
  %v1069 = vpack.c.bf16 %v1025, %v1024
  %v1070 = vpack.c.bf16 %v1027, %v1026
  %v1071 = vpack.c.bf16 %v1029, %v1028
  %v1072 = vpack.c.bf16 %v1031, %v1030
  %v1073 = vpack.c.bf16 %v1033, %v1032
  %v1074 = vpack.c.bf16 %v1035, %v1034
  %v1075 = vpack.c.bf16 %v1037, %v1036
  %v1076 = vpack.c.bf16 %v1039, %v1038
  %v1077 = vpack.c.bf16 %v1041, %v1040
  %v1078 = vpack.c.bf16 %v1043, %v1042
  %v1079 = vpack.c.bf16 %v1045, %v1044
  %v1080 = vpack.c.bf16 %v1047, %v1046
  %v1081 = vpack.c.bf16 %v1049, %v1048
  %v1082 = vld [vmem:[%s5] sm:$0xf]
  %v1083 = vld [vmem:[%s5 + $0x4] sm:$0xf]
  %v1084 = vld [vmem:[%s5 + $0x8] sm:$0xf]
  %v1085 = vld [vmem:[%s5 + $0xc] sm:$0xf]
  %v1086 = vld [vmem:[%s5 + $0x10] sm:$0xf]
  %v1087 = vld [vmem:[%s5 + $0x14] sm:$0xf]
  %v1088 = vld [vmem:[%s5 + $0x18] sm:$0xf]
  %v1089 = vld [vmem:[%s5 + $0x1c] sm:$0xf]
  %v1090 = vld [vmem:[%s6] sm:$0x1]
  %v1092 = vlaneseq
  %v1093 = vshrl.u32 %v1092, 7
  %v1094 = vsub.s32 0, %v1093
  %v1095 = vrot.slane %v1090, %v1094
  %v1105 = vunpack.c.l.b16 %v1082
  %v1106 = vunpack.c.l.b16 %v1083
  %v1107 = vunpack.c.l.b16 %v1084
  %v1108 = vunpack.c.l.b16 %v1085
  %v1109 = vunpack.c.l.b16 %v1086
  %v1110 = vunpack.c.l.b16 %v1087
  %v1111 = vunpack.c.l.b16 %v1088
  %v1112 = vunpack.c.l.b16 %v1089
  %v1113 = vpack.c.b16 %v1106, %v1105
  %v1114 = vpack.c.b16 %v1108, %v1107
  %v1115 = vpack.c.b16 %v1110, %v1109
  %v1116 = vpack.c.b16 %v1112, %v1111
  %vm1121 = vcmask 523264
  %v1123 = vsel %vm1121, %v1050, 0
  %v1126 = vsel %vm1121, %v1051, 0
  %v1129 = vsel %vm1121, %v1052, 0
  %v1132 = vsel %vm1121, %v1053, 0
  %v1135 = vsel %vm1121, %v1054, 0
  %v1138 = vsel %vm1121, %v1055, 0
  %v1141 = vsel %vm1121, %v1056, 0
  %v1144 = vsel %vm1121, %v1057, 0
  %v1147 = vsel %vm1121, %v1058, 0
  %v1150 = vsel %vm1121, %v1059, 0
  %v1153 = vsel %vm1121, %v1060, 0
  %v1156 = vsel %vm1121, %v1061, 0
  %v1159 = vsel %vm1121, %v1062, 0
  %v1162 = vsel %vm1121, %v1063, 0
  %v1165 = vsel %vm1121, %v1064, 0
  %v1168 = vsel %vm1121, %v1065, 0
  %v1171 = vsel %vm1121, %v1066, 0
  %v1174 = vsel %vm1121, %v1067, 0
  %v1177 = vsel %vm1121, %v1068, 0
  %v1180 = vsel %vm1121, %v1069, 0
  %v1183 = vsel %vm1121, %v1070, 0
  %v1186 = vsel %vm1121, %v1071, 0
  %v1189 = vsel %vm1121, %v1072, 0
  %v1192 = vsel %vm1121, %v1073, 0
  %v1195 = vsel %vm1121, %v1074, 0
  %v1198 = vsel %vm1121, %v1075, 0
  %v1201 = vsel %vm1121, %v1076, 0
  %v1204 = vsel %vm1121, %v1077, 0
  %v1207 = vsel %vm1121, %v1078, 0
  %v1210 = vsel %vm1121, %v1079, 0
  %v1213 = vsel %vm1121, %v1080, 0
  %v1216 = vsel %vm1121, %v1081, 0
  %1218 = vmatprep.subr.bf16.mxu0 0
  %1219 = vmatpush1.bf16.msra.mxu0 %v1113
  %1220 = vmatprep.subr.bf16.mxu0 0
  %1221 = vmatpush1.bf16.msra.mxu0 %v1114
  %1222 = vmatprep.subr.bf16.mxu0 0
  %1223 = vmatpush1.bf16.msra.mxu0 %v1115
  %1224 = vmatprep.subr.bf16.mxu0 0
  %1225 = vmatpush1.bf16.msra.mxu0 %v1116
  %1226 = vmatprep.subr.bf16.mxu0 0
  %1227 = vmatpush1.bf16.msra.mxu0 0
  %1228 = vmatprep.subr.bf16.mxu0 0
  %1229 = vmatpush1.bf16.msra.mxu0 0
  %1230 = vmatprep.subr.bf16.mxu0 0
  %1231 = vmatpush1.bf16.msra.mxu0 0
  %1232 = vmatprep.subr.bf16.mxu0 0
  %1233 = vmatpush1.bf16.msra.mxu0 0
  %1234 = vmatprep.subr.bf16.mxu0 0
  %1235 = vmatpush1.bf16.msra.mxu0 0
  %1236 = vmatprep.subr.bf16.mxu0 0
  %1237 = vmatpush1.bf16.msra.mxu0 0
  %1238 = vmatprep.subr.bf16.mxu0 0
  %1239 = vmatpush1.bf16.msra.mxu0 0
  %1240 = vmatprep.subr.bf16.mxu0 0
  %1241 = vmatpush1.bf16.msra.mxu0 0
  %1242 = vmatprep.subr.bf16.mxu0 0
  %1243 = vmatpush1.bf16.msra.mxu0 0
  %1244 = vmatprep.subr.bf16.mxu0 0
  %1245 = vmatpush1.bf16.msra.mxu0 0
  %1246 = vmatprep.subr.bf16.mxu0 0
  %1247 = vmatpush1.bf16.msra.mxu0 0
  %1248 = vmatprep.subr.bf16.mxu0 0
  %1249 = vmatpush1.bf16.msra.mxu0 0
  %1250 = vmatprep.mubr.bf16.mxu0 0
  %1251 = vmatmul.mubr.bf16.gmra.mrb[0].mxu0 %v1123
  %v1252 = vpop.f32.mrb[0].mxu0
  %v1253 = vadd.f32 %v1095, %v1252
  %v1254 = vpop.f32.mrb[0].mxu0
  %v1255 = vpop.f32.mrb[0].mxu0
  %v1256 = vadd.f32 %v1095, %v1255
  %v1257 = vpop.f32.mrb[0].mxu0
  %1258 = vmatprep.mubr.bf16.mxu0 0
  %1259 = vmatmul.mubr.bf16.gmra.mrb[0].mxu0 %v1126
  %v1260 = vpop.f32.mrb[0].mxu0
  %v1261 = vadd.f32 %v1095, %v1260
  %v1262 = vpop.f32.mrb[0].mxu0
  %v1263 = vpop.f32.mrb[0].mxu0
  %v1264 = vadd.f32 %v1095, %v1263
  %v1265 = vpop.f32.mrb[0].mxu0
  %1266 = vmatprep.mubr.bf16.mxu0 0
  %1267 = vmatmul.mubr.bf16.gmra.mrb[0].mxu0 %v1129
  %v1268 = vpop.f32.mrb[0].mxu0
  %v1269 = vadd.f32 %v1095, %v1268
  %v1270 = vpop.f32.mrb[0].mxu0
  %v1271 = vpop.f32.mrb[0].mxu0
  %v1272 = vadd.f32 %v1095, %v1271
  %v1273 = vpop.f32.mrb[0].mxu0
  %1274 = vmatprep.mubr.bf16.mxu0 0
  %1275 = vmatmul.mubr.bf16.gmra.mrb[0].mxu0 %v1132
  %v1276 = vpop.f32.mrb[0].mxu0
  %v1277 = vadd.f32 %v1095, %v1276
  %v1278 = vpop.f32.mrb[0].mxu0
  %v1279 = vpop.f32.mrb[0].mxu0
  %v1280 = vadd.f32 %v1095, %v1279
  %v1281 = vpop.f32.mrb[0].mxu0
  %1282 = vmatprep.mubr.bf16.mxu0 0
  %1283 = vmatmul.mubr.bf16.gmra.mrb[0].mxu0 %v1135
  %v1284 = vpop.f32.mrb[0].mxu0
  %v1285 = vadd.f32 %v1095, %v1284
  %v1286 = vpop.f32.mrb[0].mxu0
  %v1287 = vpop.f32.mrb[0].mxu0
  %v1288 = vadd.f32 %v1095, %v1287
  %v1289 = vpop.f32.mrb[0].mxu0
  %1290 = vmatprep.mubr.bf16.mxu0 0
  %1291 = vmatmul.mubr.bf16.gmra.mrb[0].mxu0 %v1138
  %v1292 = vpop.f32.mrb[0].mxu0
  %v1293 = vadd.f32 %v1095, %v1292
  %v1294 = vpop.f32.mrb[0].mxu0
  %v1295 = vpop.f32.mrb[0].mxu0
  %v1296 = vadd.f32 %v1095, %v1295
  %v1297 = vpop.f32.mrb[0].mxu0
  %1298 = vmatprep.mubr.bf16.mxu0 0
  %1299 = vmatmul.mubr.bf16.gmra.mrb[0].mxu0 %v1141
  %v1300 = vpop.f32.mrb[0].mxu0
  %v1301 = vadd.f32 %v1095, %v1300
  %v1302 = vpop.f32.mrb[0].mxu0
  %v1303 = vpop.f32.mrb[0].mxu0
  %v1304 = vadd.f32 %v1095, %v1303
  %v1305 = vpop.f32.mrb[0].mxu0
  %1306 = vmatprep.mubr.bf16.mxu0 0
  %1307 = vmatmul.mubr.bf16.gmra.mrb[0].mxu0 %v1144
  %v1308 = vpop.f32.mrb[0].mxu0
  %v1309 = vadd.f32 %v1095, %v1308
  %v1310 = vpop.f32.mrb[0].mxu0
  %v1311 = vpop.f32.mrb[0].mxu0
  %v1312 = vadd.f32 %v1095, %v1311
  %v1313 = vpop.f32.mrb[0].mxu0
  %1314 = vmatprep.mubr.bf16.mxu0 0
  %1315 = vmatmul.mubr.bf16.gmra.mrb[0].mxu0 %v1147
  %v1316 = vpop.f32.mrb[0].mxu0
  %v1317 = vadd.f32 %v1095, %v1316
  %v1318 = vpop.f32.mrb[0].mxu0
  %v1319 = vpop.f32.mrb[0].mxu0
  %v1320 = vadd.f32 %v1095, %v1319
  %v1321 = vpop.f32.mrb[0].mxu0
  %1322 = vmatprep.mubr.bf16.mxu0 0
  %1323 = vmatmul.mubr.bf16.gmra.mrb[0].mxu0 %v1150
  %v1324 = vpop.f32.mrb[0].mxu0
  %v1325 = vadd.f32 %v1095, %v1324
  %v1326 = vpop.f32.mrb[0].mxu0
  %v1327 = vpop.f32.mrb[0].mxu0
  %v1328 = vadd.f32 %v1095, %v1327
  %v1329 = vpop.f32.mrb[0].mxu0
  %1330 = vmatprep.mubr.bf16.mxu0 0
  %1331 = vmatmul.mubr.bf16.gmra.mrb[0].mxu0 %v1153
  %v1332 = vpop.f32.mrb[0].mxu0
  %v1333 = vadd.f32 %v1095, %v1332
  %v1334 = vpop.f32.mrb[0].mxu0
  %v1335 = vpop.f32.mrb[0].mxu0
  %v1336 = vadd.f32 %v1095, %v1335
  %v1337 = vpop.f32.mrb[0].mxu0
  %1338 = vmatprep.mubr.bf16.mxu0 0
  %1339 = vmatmul.mubr.bf16.gmra.mrb[0].mxu0 %v1156
  %v1340 = vpop.f32.mrb[0].mxu0
  %v1341 = vadd.f32 %v1095, %v1340
  %v1342 = vpop.f32.mrb[0].mxu0
  %v1343 = vpop.f32.mrb[0].mxu0
  %v1344 = vadd.f32 %v1095, %v1343
  %v1345 = vpop.f32.mrb[0].mxu0
  %1346 = vmatprep.mubr.bf16.mxu0 0
  %1347 = vmatmul.mubr.bf16.gmra.mrb[0].mxu0 %v1159
  %v1348 = vpop.f32.mrb[0].mxu0
  %v1349 = vadd.f32 %v1095, %v1348
  %v1350 = vpop.f32.mrb[0].mxu0
  %v1351 = vpop.f32.mrb[0].mxu0
  %v1352 = vadd.f32 %v1095, %v1351
  %v1353 = vpop.f32.mrb[0].mxu0
  %1354 = vmatprep.mubr.bf16.mxu0 0
  %1355 = vmatmul.mubr.bf16.gmra.mrb[0].mxu0 %v1162
  %v1356 = vpop.f32.mrb[0].mxu0
  %v1357 = vadd.f32 %v1095, %v1356
  %v1358 = vpop.f32.mrb[0].mxu0
  %v1359 = vpop.f32.mrb[0].mxu0
  %v1360 = vadd.f32 %v1095, %v1359
  %v1361 = vpop.f32.mrb[0].mxu0
  %1362 = vmatprep.mubr.bf16.mxu0 0
  %1363 = vmatmul.mubr.bf16.gmra.mrb[0].mxu0 %v1165
  %v1364 = vpop.f32.mrb[0].mxu0
  %v1365 = vadd.f32 %v1095, %v1364
  %v1366 = vpop.f32.mrb[0].mxu0
  %v1367 = vpop.f32.mrb[0].mxu0
  %v1368 = vadd.f32 %v1095, %v1367
  %v1369 = vpop.f32.mrb[0].mxu0
  %1370 = vmatprep.mubr.bf16.mxu0 0
  %1371 = vmatmul.mubr.bf16.gmra.mrb[0].mxu0 %v1168
  %v1372 = vpop.f32.mrb[0].mxu0
  %v1373 = vadd.f32 %v1095, %v1372
  %v1374 = vpop.f32.mrb[0].mxu0
  %v1375 = vpop.f32.mrb[0].mxu0
  %v1376 = vadd.f32 %v1095, %v1375
  %v1377 = vpop.f32.mrb[0].mxu0
  %1378 = vmatprep.mubr.bf16.mxu0 0
  %1379 = vmatmul.mubr.bf16.gmra.mrb[0].mxu0 %v1171
  %v1380 = vpop.f32.mrb[0].mxu0
  %v1381 = vadd.f32 %v1095, %v1380
  %v1382 = vpop.f32.mrb[0].mxu0
  %v1383 = vpop.f32.mrb[0].mxu0
  %v1384 = vadd.f32 %v1095, %v1383
  %v1385 = vpop.f32.mrb[0].mxu0
  %1386 = vmatprep.mubr.bf16.mxu0 0
  %1387 = vmatmul.mubr.bf16.gmra.mrb[0].mxu0 %v1174
  %v1388 = vpop.f32.mrb[0].mxu0
  %v1389 = vadd.f32 %v1095, %v1388
  %v1390 = vpop.f32.mrb[0].mxu0
  %v1391 = vpop.f32.mrb[0].mxu0
  %v1392 = vadd.f32 %v1095, %v1391
  %v1393 = vpop.f32.mrb[0].mxu0
  %1394 = vmatprep.mubr.bf16.mxu0 0
  %1395 = vmatmul.mubr.bf16.gmra.mrb[0].mxu0 %v1177
  %v1396 = vpop.f32.mrb[0].mxu0
  %v1397 = vadd.f32 %v1095, %v1396
  %v1398 = vpop.f32.mrb[0].mxu0
  %v1399 = vpop.f32.mrb[0].mxu0
  %v1400 = vadd.f32 %v1095, %v1399
  %v1401 = vpop.f32.mrb[0].mxu0
  %1402 = vmatprep.mubr.bf16.mxu0 0
  %1403 = vmatmul.mubr.bf16.gmra.mrb[0].mxu0 %v1180
  %v1404 = vpop.f32.mrb[0].mxu0
  %v1405 = vadd.f32 %v1095, %v1404
  %v1406 = vpop.f32.mrb[0].mxu0
  %v1407 = vpop.f32.mrb[0].mxu0
  %v1408 = vadd.f32 %v1095, %v1407
  %v1409 = vpop.f32.mrb[0].mxu0
  %1410 = vmatprep.mubr.bf16.mxu0 0
  %1411 = vmatmul.mubr.bf16.gmra.mrb[0].mxu0 %v1183
  %v1412 = vpop.f32.mrb[0].mxu0
  %v1413 = vadd.f32 %v1095, %v1412
  %v1414 = vpop.f32.mrb[0].mxu0
  %v1415 = vpop.f32.mrb[0].mxu0
  %v1416 = vadd.f32 %v1095, %v1415
  %v1417 = vpop.f32.mrb[0].mxu0
  %1418 = vmatprep.mubr.bf16.mxu0 0
  %1419 = vmatmul.mubr.bf16.gmra.mrb[0].mxu0 %v1186
  %v1420 = vpop.f32.mrb[0].mxu0
  %v1421 = vadd.f32 %v1095, %v1420
  %v1422 = vpop.f32.mrb[0].mxu0
  %v1423 = vpop.f32.mrb[0].mxu0
  %v1424 = vadd.f32 %v1095, %v1423
  %v1425 = vpop.f32.mrb[0].mxu0
  %1426 = vmatprep.mubr.bf16.mxu0 0
  %1427 = vmatmul.mubr.bf16.gmra.mrb[0].mxu0 %v1189
  %v1428 = vpop.f32.mrb[0].mxu0
  %v1429 = vadd.f32 %v1095, %v1428
  %v1430 = vpop.f32.mrb[0].mxu0
  %v1431 = vpop.f32.mrb[0].mxu0
  %v1432 = vadd.f32 %v1095, %v1431
  %v1433 = vpop.f32.mrb[0].mxu0
  %1434 = vmatprep.mubr.bf16.mxu0 0
  %1435 = vmatmul.mubr.bf16.gmra.mrb[0].mxu0 %v1192
  %v1436 = vpop.f32.mrb[0].mxu0
  %v1437 = vadd.f32 %v1095, %v1436
  %v1438 = vpop.f32.mrb[0].mxu0
  %v1439 = vpop.f32.mrb[0].mxu0
  %v1440 = vadd.f32 %v1095, %v1439
  %v1441 = vpop.f32.mrb[0].mxu0
  %1442 = vmatprep.mubr.bf16.mxu0 0
  %1443 = vmatmul.mubr.bf16.gmra.mrb[0].mxu0 %v1195
  %v1444 = vpop.f32.mrb[0].mxu0
  %v1445 = vadd.f32 %v1095, %v1444
  %v1446 = vpop.f32.mrb[0].mxu0
  %v1447 = vpop.f32.mrb[0].mxu0
  %v1448 = vadd.f32 %v1095, %v1447
  %v1449 = vpop.f32.mrb[0].mxu0
  %1450 = vmatprep.mubr.bf16.mxu0 0
  %1451 = vmatmul.mubr.bf16.gmra.mrb[0].mxu0 %v1198
  %v1452 = vpop.f32.mrb[0].mxu0
  %v1453 = vadd.f32 %v1095, %v1452
  %v1454 = vpop.f32.mrb[0].mxu0
  %v1455 = vpop.f32.mrb[0].mxu0
  %v1456 = vadd.f32 %v1095, %v1455
  %v1457 = vpop.f32.mrb[0].mxu0
  %1458 = vmatprep.mubr.bf16.mxu0 0
  %1459 = vmatmul.mubr.bf16.gmra.mrb[0].mxu0 %v1201
  %v1460 = vpop.f32.mrb[0].mxu0
  %v1461 = vadd.f32 %v1095, %v1460
  %v1462 = vpop.f32.mrb[0].mxu0
  %v1463 = vpop.f32.mrb[0].mxu0
  %v1464 = vadd.f32 %v1095, %v1463
  %v1465 = vpop.f32.mrb[0].mxu0
  %1466 = vmatprep.mubr.bf16.mxu0 0
  %1467 = vmatmul.mubr.bf16.gmra.mrb[0].mxu0 %v1204
  %v1468 = vpop.f32.mrb[0].mxu0
  %v1469 = vadd.f32 %v1095, %v1468
  %v1470 = vpop.f32.mrb[0].mxu0
  %v1471 = vpop.f32.mrb[0].mxu0
  %v1472 = vadd.f32 %v1095, %v1471
  %v1473 = vpop.f32.mrb[0].mxu0
  %1474 = vmatprep.mubr.bf16.mxu0 0
  %1475 = vmatmul.mubr.bf16.gmra.mrb[0].mxu0 %v1207
  %v1476 = vpop.f32.mrb[0].mxu0
  %v1477 = vadd.f32 %v1095, %v1476
  %v1478 = vpop.f32.mrb[0].mxu0
  %v1479 = vpop.f32.mrb[0].mxu0
  %v1480 = vadd.f32 %v1095, %v1479
  %v1481 = vpop.f32.mrb[0].mxu0
  %1482 = vmatprep.mubr.bf16.mxu0 0
  %1483 = vmatmul.mubr.bf16.gmra.mrb[0].mxu0 %v1210
  %v1484 = vpop.f32.mrb[0].mxu0
  %v1485 = vadd.f32 %v1095, %v1484
  %v1486 = vpop.f32.mrb[0].mxu0
  %v1487 = vpop.f32.mrb[0].mxu0
  %v1488 = vadd.f32 %v1095, %v1487
  %v1489 = vpop.f32.mrb[0].mxu0
  %1490 = vmatprep.mubr.bf16.mxu0 0
  %1491 = vmatmul.mubr.bf16.gmra.mrb[0].mxu0 %v1213
  %v1492 = vpop.f32.mrb[0].mxu0
  %v1493 = vadd.f32 %v1095, %v1492
  %v1494 = vpop.f32.mrb[0].mxu0
  %v1495 = vpop.f32.mrb[0].mxu0
  %v1496 = vadd.f32 %v1095, %v1495
  %v1497 = vpop.f32.mrb[0].mxu0
  %1498 = vmatprep.mubr.bf16.mxu0 0
  %1499 = vmatmul.mubr.bf16.gmra.mrb[0].mxu0 %v1216
  %v1500 = vpop.f32.mrb[0].mxu0
  %v1501 = vadd.f32 %v1095, %v1500
  %v1502 = vpop.f32.mrb[0].mxu0
  %v1503 = vpop.f32.mrb[0].mxu0
  %v1504 = vadd.f32 %v1095, %v1503
  %v1505 = vpop.f32.mrb[0].mxu0
  %1506 = vdwg.mxu0
  %v1507 = vmax.f32 %v1253, 0.0
  %v1508 = vmax.f32 %v1256, 0.0
  %v1509 = vmax.f32 %v1261, 0.0
  %v1510 = vmax.f32 %v1264, 0.0
  %v1511 = vmax.f32 %v1269, 0.0
  %v1512 = vmax.f32 %v1272, 0.0
  %v1513 = vmax.f32 %v1277, 0.0
  %v1514 = vmax.f32 %v1280, 0.0
  %v1515 = vmax.f32 %v1285, 0.0
  %v1516 = vmax.f32 %v1288, 0.0
  %v1517 = vmax.f32 %v1293, 0.0
  %v1518 = vmax.f32 %v1296, 0.0
  %v1519 = vmax.f32 %v1301, 0.0
  %v1520 = vmax.f32 %v1304, 0.0
  %v1521 = vmax.f32 %v1309, 0.0
  %v1522 = vmax.f32 %v1312, 0.0
  %v1523 = vmax.f32 %v1317, 0.0
  %v1524 = vmax.f32 %v1320, 0.0
  %v1525 = vmax.f32 %v1325, 0.0
  %v1526 = vmax.f32 %v1328, 0.0
  %v1527 = vmax.f32 %v1333, 0.0
  %v1528 = vmax.f32 %v1336, 0.0
  %v1529 = vmax.f32 %v1341, 0.0
  %v1530 = vmax.f32 %v1344, 0.0
  %v1531 = vmax.f32 %v1349, 0.0
  %v1532 = vmax.f32 %v1352, 0.0
  %v1533 = vmax.f32 %v1357, 0.0
  %v1534 = vmax.f32 %v1360, 0.0
  %v1535 = vmax.f32 %v1365, 0.0
  %v1536 = vmax.f32 %v1368, 0.0
  %v1537 = vmax.f32 %v1373, 0.0
  %v1538 = vmax.f32 %v1376, 0.0
  %v1539 = vmax.f32 %v1381, 0.0
  %v1540 = vmax.f32 %v1384, 0.0
  %v1541 = vmax.f32 %v1389, 0.0
  %v1542 = vmax.f32 %v1392, 0.0
  %v1543 = vmax.f32 %v1397, 0.0
  %v1544 = vmax.f32 %v1400, 0.0
  %v1545 = vmax.f32 %v1405, 0.0
  %v1546 = vmax.f32 %v1408, 0.0
  %v1547 = vmax.f32 %v1413, 0.0
  %v1548 = vmax.f32 %v1416, 0.0
  %v1549 = vmax.f32 %v1421, 0.0
  %v1550 = vmax.f32 %v1424, 0.0
  %v1551 = vmax.f32 %v1429, 0.0
  %v1552 = vmax.f32 %v1432, 0.0
  %v1553 = vmax.f32 %v1437, 0.0
  %v1554 = vmax.f32 %v1440, 0.0
  %v1555 = vmax.f32 %v1445, 0.0
  %v1556 = vmax.f32 %v1448, 0.0
  %v1557 = vmax.f32 %v1453, 0.0
  %v1558 = vmax.f32 %v1456, 0.0
  %v1559 = vmax.f32 %v1461, 0.0
  %v1560 = vmax.f32 %v1464, 0.0
  %v1561 = vmax.f32 %v1469, 0.0
  %v1562 = vmax.f32 %v1472, 0.0
  %v1563 = vmax.f32 %v1477, 0.0
  %v1564 = vmax.f32 %v1480, 0.0
  %v1565 = vmax.f32 %v1485, 0.0
  %v1566 = vmax.f32 %v1488, 0.0
  %v1567 = vmax.f32 %v1493, 0.0
  %v1568 = vmax.f32 %v1496, 0.0
  %v1569 = vmax.f32 %v1501, 0.0
  %v1570 = vmax.f32 %v1504, 0.0
  %v1571 = vpack.c.bf16 %v1508, %v1507
  %v1572 = vpack.c.bf16 %v1510, %v1509
  %v1573 = vpack.c.bf16 %v1512, %v1511
  %v1574 = vpack.c.bf16 %v1514, %v1513
  %v1575 = vpack.c.bf16 %v1516, %v1515
  %v1576 = vpack.c.bf16 %v1518, %v1517
  %v1577 = vpack.c.bf16 %v1520, %v1519
  %v1578 = vpack.c.bf16 %v1522, %v1521
  %v1579 = vpack.c.bf16 %v1524, %v1523
  %v1580 = vpack.c.bf16 %v1526, %v1525
  %v1581 = vpack.c.bf16 %v1528, %v1527
  %v1582 = vpack.c.bf16 %v1530, %v1529
  %v1583 = vpack.c.bf16 %v1532, %v1531
  %v1584 = vpack.c.bf16 %v1534, %v1533
  %v1585 = vpack.c.bf16 %v1536, %v1535
  %v1586 = vpack.c.bf16 %v1538, %v1537
  %v1587 = vpack.c.bf16 %v1540, %v1539
  %v1588 = vpack.c.bf16 %v1542, %v1541
  %v1589 = vpack.c.bf16 %v1544, %v1543
  %v1590 = vpack.c.bf16 %v1546, %v1545
  %v1591 = vpack.c.bf16 %v1548, %v1547
  %v1592 = vpack.c.bf16 %v1550, %v1549
  %v1593 = vpack.c.bf16 %v1552, %v1551
  %v1594 = vpack.c.bf16 %v1554, %v1553
  %v1595 = vpack.c.bf16 %v1556, %v1555
  %v1596 = vpack.c.bf16 %v1558, %v1557
  %v1597 = vpack.c.bf16 %v1560, %v1559
  %v1598 = vpack.c.bf16 %v1562, %v1561
  %v1599 = vpack.c.bf16 %v1564, %v1563
  %v1600 = vpack.c.bf16 %v1566, %v1565
  %v1601 = vpack.c.bf16 %v1568, %v1567
  %v1602 = vpack.c.bf16 %v1570, %v1569
  %v1603 = vld [vmem:[%s7] sm:$0xf]
  %v1604 = vld [vmem:[%s7 + $0x4] sm:$0xf]
  %v1605 = vld [vmem:[%s7 + $0x8] sm:$0xf]
  %v1606 = vld [vmem:[%s7 + $0xc] sm:$0xf]
  %v1607 = vld [vmem:[%s8] sm:$0x1]
  %v1609 = vlaneseq
  %v1610 = vshrl.u32 %v1609, 7
  %v1611 = vsub.s32 0, %v1610
  %v1612 = vrot.slane %v1607, %v1611
  %v1618 = vunpack.c.l.b16 %v1603
  %v1619 = vunpack.c.l.b16 %v1604
  %v1620 = vunpack.c.l.b16 %v1605
  %v1621 = vunpack.c.l.b16 %v1606
  %v1622 = vpack.c.b16 %v1619, %v1618
  %v1623 = vpack.c.b16 %v1621, %v1620
  %vm1626 = vcmask 261120
  %v1628 = vsel %vm1626, %v1571, 0
  %v1631 = vsel %vm1626, %v1572, 0
  %v1634 = vsel %vm1626, %v1573, 0
  %v1637 = vsel %vm1626, %v1574, 0
  %v1640 = vsel %vm1626, %v1575, 0
  %v1643 = vsel %vm1626, %v1576, 0
  %v1646 = vsel %vm1626, %v1577, 0
  %v1649 = vsel %vm1626, %v1578, 0
  %v1652 = vsel %vm1626, %v1579, 0
  %v1655 = vsel %vm1626, %v1580, 0
  %v1658 = vsel %vm1626, %v1581, 0
  %v1661 = vsel %vm1626, %v1582, 0
  %v1664 = vsel %vm1626, %v1583, 0
  %v1667 = vsel %vm1626, %v1584, 0
  %v1670 = vsel %vm1626, %v1585, 0
  %v1673 = vsel %vm1626, %v1586, 0
  %v1676 = vsel %vm1626, %v1587, 0
  %v1679 = vsel %vm1626, %v1588, 0
  %v1682 = vsel %vm1626, %v1589, 0
  %v1685 = vsel %vm1626, %v1590, 0
  %v1688 = vsel %vm1626, %v1591, 0
  %v1691 = vsel %vm1626, %v1592, 0
  %v1694 = vsel %vm1626, %v1593, 0
  %v1697 = vsel %vm1626, %v1594, 0
  %v1700 = vsel %vm1626, %v1595, 0
  %v1703 = vsel %vm1626, %v1596, 0
  %v1706 = vsel %vm1626, %v1597, 0
  %v1709 = vsel %vm1626, %v1598, 0
  %v1712 = vsel %vm1626, %v1599, 0
  %v1715 = vsel %vm1626, %v1600, 0
  %v1718 = vsel %vm1626, %v1601, 0
  %v1721 = vsel %vm1626, %v1602, 0
  %1723 = vmatprep.subr.bf16.mxu0 0
  %1724 = vmatpush1.bf16.msra.mxu0 %v1622
  %1725 = vmatprep.subr.bf16.mxu0 0
  %1726 = vmatpush1.bf16.msra.mxu0 %v1623
  %1727 = vmatprep.subr.bf16.mxu0 0
  %1728 = vmatpush1.bf16.msra.mxu0 0
  %1729 = vmatprep.subr.bf16.mxu0 0
  %1730 = vmatpush1.bf16.msra.mxu0 0
  %1731 = vmatprep.subr.bf16.mxu0 0
  %1732 = vmatpush1.bf16.msra.mxu0 0
  %1733 = vmatprep.subr.bf16.mxu0 0
  %1734 = vmatpush1.bf16.msra.mxu0 0
  %1735 = vmatprep.subr.bf16.mxu0 0
  %1736 = vmatpush1.bf16.msra.mxu0 0
  %1737 = vmatprep.subr.bf16.mxu0 0
  %1738 = vmatpush1.bf16.msra.mxu0 0
  %1739 = vmatprep.subr.bf16.mxu0 0
  %1740 = vmatpush1.bf16.msra.mxu0 0
  %1741 = vmatprep.subr.bf16.mxu0 0
  %1742 = vmatpush1.bf16.msra.mxu0 0
  %1743 = vmatprep.subr.bf16.mxu0 0
  %1744 = vmatpush1.bf16.msra.mxu0 0
  %1745 = vmatprep.subr.bf16.mxu0 0
  %1746 = vmatpush1.bf16.msra.mxu0 0
  %1747 = vmatprep.subr.bf16.mxu0 0
  %1748 = vmatpush1.bf16.msra.mxu0 0
  %1749 = vmatprep.subr.bf16.mxu0 0
  %1750 = vmatpush1.bf16.msra.mxu0 0
  %1751 = vmatprep.subr.bf16.mxu0 0
  %1752 = vmatpush1.bf16.msra.mxu0 0
  %1753 = vmatprep.subr.bf16.mxu0 0
  %1754 = vmatpush1.bf16.msra.mxu0 0
  %1755 = vmatprep.mubr.bf16.mxu0 0
  %1756 = vmatmul.mubr.bf16.gmra.mrb[0].mxu0 %v1628
  %v1757 = vpop.f32.mrb[0].mxu0
  %v1758 = vadd.f32 %v1612, %v1757
  %v1759 = vpop.f32.mrb[0].mxu0
  %v1760 = vpop.f32.mrb[0].mxu0
  %v1761 = vadd.f32 %v1612, %v1760
  %v1762 = vpop.f32.mrb[0].mxu0
  %1763 = vmatprep.mubr.bf16.mxu0 0
  %1764 = vmatmul.mubr.bf16.gmra.mrb[0].mxu0 %v1631
  %v1765 = vpop.f32.mrb[0].mxu0
  %v1766 = vadd.f32 %v1612, %v1765
  %v1767 = vpop.f32.mrb[0].mxu0
  %v1768 = vpop.f32.mrb[0].mxu0
  %v1769 = vadd.f32 %v1612, %v1768
  %v1770 = vpop.f32.mrb[0].mxu0
  %1771 = vmatprep.mubr.bf16.mxu0 0
  %1772 = vmatmul.mubr.bf16.gmra.mrb[0].mxu0 %v1634
  %v1773 = vpop.f32.mrb[0].mxu0
  %v1774 = vadd.f32 %v1612, %v1773
  %v1775 = vpop.f32.mrb[0].mxu0
  %v1776 = vpop.f32.mrb[0].mxu0
  %v1777 = vadd.f32 %v1612, %v1776
  %v1778 = vpop.f32.mrb[0].mxu0
  %1779 = vmatprep.mubr.bf16.mxu0 0
  %1780 = vmatmul.mubr.bf16.gmra.mrb[0].mxu0 %v1637
  %v1781 = vpop.f32.mrb[0].mxu0
  %v1782 = vadd.f32 %v1612, %v1781
  %v1783 = vpop.f32.mrb[0].mxu0
  %v1784 = vpop.f32.mrb[0].mxu0
  %v1785 = vadd.f32 %v1612, %v1784
  %v1786 = vpop.f32.mrb[0].mxu0
  %1787 = vmatprep.mubr.bf16.mxu0 0
  %1788 = vmatmul.mubr.bf16.gmra.mrb[0].mxu0 %v1640
  %v1789 = vpop.f32.mrb[0].mxu0
  %v1790 = vadd.f32 %v1612, %v1789
  %v1791 = vpop.f32.mrb[0].mxu0
  %v1792 = vpop.f32.mrb[0].mxu0
  %v1793 = vadd.f32 %v1612, %v1792
  %v1794 = vpop.f32.mrb[0].mxu0
  %1795 = vmatprep.mubr.bf16.mxu0 0
  %1796 = vmatmul.mubr.bf16.gmra.mrb[0].mxu0 %v1643
  %v1797 = vpop.f32.mrb[0].mxu0
  %v1798 = vadd.f32 %v1612, %v1797
  %v1799 = vpop.f32.mrb[0].mxu0
  %v1800 = vpop.f32.mrb[0].mxu0
  %v1801 = vadd.f32 %v1612, %v1800
  %v1802 = vpop.f32.mrb[0].mxu0
  %1803 = vmatprep.mubr.bf16.mxu0 0
  %1804 = vmatmul.mubr.bf16.gmra.mrb[0].mxu0 %v1646
  %v1805 = vpop.f32.mrb[0].mxu0
  %v1806 = vadd.f32 %v1612, %v1805
  %v1807 = vpop.f32.mrb[0].mxu0
  %v1808 = vpop.f32.mrb[0].mxu0
  %v1809 = vadd.f32 %v1612, %v1808
  %v1810 = vpop.f32.mrb[0].mxu0
  %1811 = vmatprep.mubr.bf16.mxu0 0
  %1812 = vmatmul.mubr.bf16.gmra.mrb[0].mxu0 %v1649
  %v1813 = vpop.f32.mrb[0].mxu0
  %v1814 = vadd.f32 %v1612, %v1813
  %v1815 = vpop.f32.mrb[0].mxu0
  %v1816 = vpop.f32.mrb[0].mxu0
  %v1817 = vadd.f32 %v1612, %v1816
  %v1818 = vpop.f32.mrb[0].mxu0
  %1819 = vmatprep.mubr.bf16.mxu0 0
  %1820 = vmatmul.mubr.bf16.gmra.mrb[0].mxu0 %v1652
  %v1821 = vpop.f32.mrb[0].mxu0
  %v1822 = vadd.f32 %v1612, %v1821
  %v1823 = vpop.f32.mrb[0].mxu0
  %v1824 = vpop.f32.mrb[0].mxu0
  %v1825 = vadd.f32 %v1612, %v1824
  %v1826 = vpop.f32.mrb[0].mxu0
  %1827 = vmatprep.mubr.bf16.mxu0 0
  %1828 = vmatmul.mubr.bf16.gmra.mrb[0].mxu0 %v1655
  %v1829 = vpop.f32.mrb[0].mxu0
  %v1830 = vadd.f32 %v1612, %v1829
  %v1831 = vpop.f32.mrb[0].mxu0
  %v1832 = vpop.f32.mrb[0].mxu0
  %v1833 = vadd.f32 %v1612, %v1832
  %v1834 = vpop.f32.mrb[0].mxu0
  %1835 = vmatprep.mubr.bf16.mxu0 0
  %1836 = vmatmul.mubr.bf16.gmra.mrb[0].mxu0 %v1658
  %v1837 = vpop.f32.mrb[0].mxu0
  %v1838 = vadd.f32 %v1612, %v1837
  %v1839 = vpop.f32.mrb[0].mxu0
  %v1840 = vpop.f32.mrb[0].mxu0
  %v1841 = vadd.f32 %v1612, %v1840
  %v1842 = vpop.f32.mrb[0].mxu0
  %1843 = vmatprep.mubr.bf16.mxu0 0
  %1844 = vmatmul.mubr.bf16.gmra.mrb[0].mxu0 %v1661
  %v1845 = vpop.f32.mrb[0].mxu0
  %v1846 = vadd.f32 %v1612, %v1845
  %v1847 = vpop.f32.mrb[0].mxu0
  %v1848 = vpop.f32.mrb[0].mxu0
  %v1849 = vadd.f32 %v1612, %v1848
  %v1850 = vpop.f32.mrb[0].mxu0
  %1851 = vmatprep.mubr.bf16.mxu0 0
  %1852 = vmatmul.mubr.bf16.gmra.mrb[0].mxu0 %v1664
  %v1853 = vpop.f32.mrb[0].mxu0
  %v1854 = vadd.f32 %v1612, %v1853
  %v1855 = vpop.f32.mrb[0].mxu0
  %v1856 = vpop.f32.mrb[0].mxu0
  %v1857 = vadd.f32 %v1612, %v1856
  %v1858 = vpop.f32.mrb[0].mxu0
  %1859 = vmatprep.mubr.bf16.mxu0 0
  %1860 = vmatmul.mubr.bf16.gmra.mrb[0].mxu0 %v1667
  %v1861 = vpop.f32.mrb[0].mxu0
  %v1862 = vadd.f32 %v1612, %v1861
  %v1863 = vpop.f32.mrb[0].mxu0
  %v1864 = vpop.f32.mrb[0].mxu0
  %v1865 = vadd.f32 %v1612, %v1864
  %v1866 = vpop.f32.mrb[0].mxu0
  %1867 = vmatprep.mubr.bf16.mxu0 0
  %1868 = vmatmul.mubr.bf16.gmra.mrb[0].mxu0 %v1670
  %v1869 = vpop.f32.mrb[0].mxu0
  %v1870 = vadd.f32 %v1612, %v1869
  %v1871 = vpop.f32.mrb[0].mxu0
  %v1872 = vpop.f32.mrb[0].mxu0
  %v1873 = vadd.f32 %v1612, %v1872
  %v1874 = vpop.f32.mrb[0].mxu0
  %1875 = vmatprep.mubr.bf16.mxu0 0
  %1876 = vmatmul.mubr.bf16.gmra.mrb[0].mxu0 %v1673
  %v1877 = vpop.f32.mrb[0].mxu0
  %v1878 = vadd.f32 %v1612, %v1877
  %v1879 = vpop.f32.mrb[0].mxu0
  %v1880 = vpop.f32.mrb[0].mxu0
  %v1881 = vadd.f32 %v1612, %v1880
  %v1882 = vpop.f32.mrb[0].mxu0
  %1883 = vmatprep.mubr.bf16.mxu0 0
  %1884 = vmatmul.mubr.bf16.gmra.mrb[0].mxu0 %v1676
  %v1885 = vpop.f32.mrb[0].mxu0
  %v1886 = vadd.f32 %v1612, %v1885
  %v1887 = vpop.f32.mrb[0].mxu0
  %v1888 = vpop.f32.mrb[0].mxu0
  %v1889 = vadd.f32 %v1612, %v1888
  %v1890 = vpop.f32.mrb[0].mxu0
  %1891 = vmatprep.mubr.bf16.mxu0 0
  %1892 = vmatmul.mubr.bf16.gmra.mrb[0].mxu0 %v1679
  %v1893 = vpop.f32.mrb[0].mxu0
  %v1894 = vadd.f32 %v1612, %v1893
  %v1895 = vpop.f32.mrb[0].mxu0
  %v1896 = vpop.f32.mrb[0].mxu0
  %v1897 = vadd.f32 %v1612, %v1896
  %v1898 = vpop.f32.mrb[0].mxu0
  %1899 = vmatprep.mubr.bf16.mxu0 0
  %1900 = vmatmul.mubr.bf16.gmra.mrb[0].mxu0 %v1682
  %v1901 = vpop.f32.mrb[0].mxu0
  %v1902 = vadd.f32 %v1612, %v1901
  %v1903 = vpop.f32.mrb[0].mxu0
  %v1904 = vpop.f32.mrb[0].mxu0
  %v1905 = vadd.f32 %v1612, %v1904
  %v1906 = vpop.f32.mrb[0].mxu0
  %1907 = vmatprep.mubr.bf16.mxu0 0
  %1908 = vmatmul.mubr.bf16.gmra.mrb[0].mxu0 %v1685
  %v1909 = vpop.f32.mrb[0].mxu0
  %v1910 = vadd.f32 %v1612, %v1909
  %v1911 = vpop.f32.mrb[0].mxu0
  %v1912 = vpop.f32.mrb[0].mxu0
  %v1913 = vadd.f32 %v1612, %v1912
  %v1914 = vpop.f32.mrb[0].mxu0
  %1915 = vmatprep.mubr.bf16.mxu0 0
  %1916 = vmatmul.mubr.bf16.gmra.mrb[0].mxu0 %v1688
  %v1917 = vpop.f32.mrb[0].mxu0
  %v1918 = vadd.f32 %v1612, %v1917
  %v1919 = vpop.f32.mrb[0].mxu0
  %v1920 = vpop.f32.mrb[0].mxu0
  %v1921 = vadd.f32 %v1612, %v1920
  %v1922 = vpop.f32.mrb[0].mxu0
  %1923 = vmatprep.mubr.bf16.mxu0 0
  %1924 = vmatmul.mubr.bf16.gmra.mrb[0].mxu0 %v1691
  %v1925 = vpop.f32.mrb[0].mxu0
  %v1926 = vadd.f32 %v1612, %v1925
  %v1927 = vpop.f32.mrb[0].mxu0
  %v1928 = vpop.f32.mrb[0].mxu0
  %v1929 = vadd.f32 %v1612, %v1928
  %v1930 = vpop.f32.mrb[0].mxu0
  %1931 = vmatprep.mubr.bf16.mxu0 0
  %1932 = vmatmul.mubr.bf16.gmra.mrb[0].mxu0 %v1694
  %v1933 = vpop.f32.mrb[0].mxu0
  %v1934 = vadd.f32 %v1612, %v1933
  %v1935 = vpop.f32.mrb[0].mxu0
  %v1936 = vpop.f32.mrb[0].mxu0
  %v1937 = vadd.f32 %v1612, %v1936
  %v1938 = vpop.f32.mrb[0].mxu0
  %1939 = vmatprep.mubr.bf16.mxu0 0
  %1940 = vmatmul.mubr.bf16.gmra.mrb[0].mxu0 %v1697
  %v1941 = vpop.f32.mrb[0].mxu0
  %v1942 = vadd.f32 %v1612, %v1941
  %v1943 = vpop.f32.mrb[0].mxu0
  %v1944 = vpop.f32.mrb[0].mxu0
  %v1945 = vadd.f32 %v1612, %v1944
  %v1946 = vpop.f32.mrb[0].mxu0
  %1947 = vmatprep.mubr.bf16.mxu0 0
  %1948 = vmatmul.mubr.bf16.gmra.mrb[0].mxu0 %v1700
  %v1949 = vpop.f32.mrb[0].mxu0
  %v1950 = vadd.f32 %v1612, %v1949
  %v1951 = vpop.f32.mrb[0].mxu0
  %v1952 = vpop.f32.mrb[0].mxu0
  %v1953 = vadd.f32 %v1612, %v1952
  %v1954 = vpop.f32.mrb[0].mxu0
  %1955 = vmatprep.mubr.bf16.mxu0 0
  %1956 = vmatmul.mubr.bf16.gmra.mrb[0].mxu0 %v1703
  %v1957 = vpop.f32.mrb[0].mxu0
  %v1958 = vadd.f32 %v1612, %v1957
  %v1959 = vpop.f32.mrb[0].mxu0
  %v1960 = vpop.f32.mrb[0].mxu0
  %v1961 = vadd.f32 %v1612, %v1960
  %v1962 = vpop.f32.mrb[0].mxu0
  %1963 = vmatprep.mubr.bf16.mxu0 0
  %1964 = vmatmul.mubr.bf16.gmra.mrb[0].mxu0 %v1706
  %v1965 = vpop.f32.mrb[0].mxu0
  %v1966 = vadd.f32 %v1612, %v1965
  %v1967 = vpop.f32.mrb[0].mxu0
  %v1968 = vpop.f32.mrb[0].mxu0
  %v1969 = vadd.f32 %v1612, %v1968
  %v1970 = vpop.f32.mrb[0].mxu0
  %1971 = vmatprep.mubr.bf16.mxu0 0
  %1972 = vmatmul.mubr.bf16.gmra.mrb[0].mxu0 %v1709
  %v1973 = vpop.f32.mrb[0].mxu0
  %v1974 = vadd.f32 %v1612, %v1973
  %v1975 = vpop.f32.mrb[0].mxu0
  %v1976 = vpop.f32.mrb[0].mxu0
  %v1977 = vadd.f32 %v1612, %v1976
  %v1978 = vpop.f32.mrb[0].mxu0
  %1979 = vmatprep.mubr.bf16.mxu0 0
  %1980 = vmatmul.mubr.bf16.gmra.mrb[0].mxu0 %v1712
  %v1981 = vpop.f32.mrb[0].mxu0
  %v1982 = vadd.f32 %v1612, %v1981
  %v1983 = vpop.f32.mrb[0].mxu0
  %v1984 = vpop.f32.mrb[0].mxu0
  %v1985 = vadd.f32 %v1612, %v1984
  %v1986 = vpop.f32.mrb[0].mxu0
  %1987 = vmatprep.mubr.bf16.mxu0 0
  %1988 = vmatmul.mubr.bf16.gmra.mrb[0].mxu0 %v1715
  %v1989 = vpop.f32.mrb[0].mxu0
  %v1990 = vadd.f32 %v1612, %v1989
  %v1991 = vpop.f32.mrb[0].mxu0
  %v1992 = vpop.f32.mrb[0].mxu0
  %v1993 = vadd.f32 %v1612, %v1992
  %v1994 = vpop.f32.mrb[0].mxu0
  %1995 = vmatprep.mubr.bf16.mxu0 0
  %1996 = vmatmul.mubr.bf16.gmra.mrb[0].mxu0 %v1718
  %v1997 = vpop.f32.mrb[0].mxu0
  %v1998 = vadd.f32 %v1612, %v1997
  %v1999 = vpop.f32.mrb[0].mxu0
  %v2000 = vpop.f32.mrb[0].mxu0
  %v2001 = vadd.f32 %v1612, %v2000
  %v2002 = vpop.f32.mrb[0].mxu0
  %2003 = vmatprep.mubr.bf16.mxu0 0
  %2004 = vmatmul.mubr.bf16.gmra.mrb[0].mxu0 %v1721
  %v2005 = vpop.f32.mrb[0].mxu0
  %v2006 = vadd.f32 %v1612, %v2005
  %v2007 = vpop.f32.mrb[0].mxu0
  %v2008 = vpop.f32.mrb[0].mxu0
  %v2009 = vadd.f32 %v1612, %v2008
  %v2010 = vpop.f32.mrb[0].mxu0
  %2011 = vdwg.mxu0
  %vm2012 = vcmask 31744
  %2013 = vst.msk [vmem:[%s9] sm:$0xff] %vm2012, %v1758
  %2014 = vst.msk [vmem:[%s9 + $0x8] sm:$0xff] %vm2012, %v1761
  %2015 = vst.msk [vmem:[%s9 + $0x10] sm:$0xff] %vm2012, %v1766
  %2016 = vst.msk [vmem:[%s9 + $0x18] sm:$0xff] %vm2012, %v1769
  %2017 = vst.msk [vmem:[%s9 + $0x20] sm:$0xff] %vm2012, %v1774
  %2018 = vst.msk [vmem:[%s9 + $0x28] sm:$0xff] %vm2012, %v1777
  %2019 = vst.msk [vmem:[%s9 + $0x30] sm:$0xff] %vm2012, %v1782
  %2020 = vst.msk [vmem:[%s9 + $0x38] sm:$0xff] %vm2012, %v1785
  %2021 = vst.msk [vmem:[%s9 + $0x40] sm:$0xff] %vm2012, %v1790
  %2022 = vst.msk [vmem:[%s9 + $0x48] sm:$0xff] %vm2012, %v1793
  %2023 = vst.msk [vmem:[%s9 + $0x50] sm:$0xff] %vm2012, %v1798
  %2024 = vst.msk [vmem:[%s9 + $0x58] sm:$0xff] %vm2012, %v1801
  %2025 = vst.msk [vmem:[%s9 + $0x60] sm:$0xff] %vm2012, %v1806
  %2026 = vst.msk [vmem:[%s9 + $0x68] sm:$0xff] %vm2012, %v1809
  %2027 = vst.msk [vmem:[%s9 + $0x70] sm:$0xff] %vm2012, %v1814
  %2028 = vst.msk [vmem:[%s9 + $0x78] sm:$0xff] %vm2012, %v1817
  %2029 = vst.msk [vmem:[%s9 + $0x80] sm:$0xff] %vm2012, %v1822
  %2030 = vst.msk [vmem:[%s9 + $0x88] sm:$0xff] %vm2012, %v1825
  %2031 = vst.msk [vmem:[%s9 + $0x90] sm:$0xff] %vm2012, %v1830
  %2032 = vst.msk [vmem:[%s9 + $0x98] sm:$0xff] %vm2012, %v1833
  %2033 = vst.msk [vmem:[%s9 + $0xa0] sm:$0xff] %vm2012, %v1838
  %2034 = vst.msk [vmem:[%s9 + $0xa8] sm:$0xff] %vm2012, %v1841
  %2035 = vst.msk [vmem:[%s9 + $0xb0] sm:$0xff] %vm2012, %v1846
  %2036 = vst.msk [vmem:[%s9 + $0xb8] sm:$0xff] %vm2012, %v1849
  %2037 = vst.msk [vmem:[%s9 + $0xc0] sm:$0xff] %vm2012, %v1854
  %2038 = vst.msk [vmem:[%s9 + $0xc8] sm:$0xff] %vm2012, %v1857
  %2039 = vst.msk [vmem:[%s9 + $0xd0] sm:$0xff] %vm2012, %v1862
  %2040 = vst.msk [vmem:[%s9 + $0xd8] sm:$0xff] %vm2012, %v1865
  %2041 = vst.msk [vmem:[%s9 + $0xe0] sm:$0xff] %vm2012, %v1870
  %2042 = vst.msk [vmem:[%s9 + $0xe8] sm:$0xff] %vm2012, %v1873
  %2043 = vst.msk [vmem:[%s9 + $0xf0] sm:$0xff] %vm2012, %v1878
  %2044 = vst.msk [vmem:[%s9 + $0xf8] sm:$0xff] %vm2012, %v1881
  %2045 = vst.msk [vmem:[%s9 + $0x100] sm:$0xff] %vm2012, %v1886
  %2046 = vst.msk [vmem:[%s9 + $0x108] sm:$0xff] %vm2012, %v1889
  %2047 = vst.msk [vmem:[%s9 + $0x110] sm:$0xff] %vm2012, %v1894
  %2048 = vst.msk [vmem:[%s9 + $0x118] sm:$0xff] %vm2012, %v1897
  %2049 = vst.msk [vmem:[%s9 + $0x120] sm:$0xff] %vm2012, %v1902
  %2050 = vst.msk [vmem:[%s9 + $0x128] sm:$0xff] %vm2012, %v1905
  %2051 = vst.msk [vmem:[%s9 + $0x130] sm:$0xff] %vm2012, %v1910
  %2052 = vst.msk [vmem:[%s9 + $0x138] sm:$0xff] %vm2012, %v1913
  %2053 = vst.msk [vmem:[%s9 + $0x140] sm:$0xff] %vm2012, %v1918
  %2054 = vst.msk [vmem:[%s9 + $0x148] sm:$0xff] %vm2012, %v1921
  %2055 = vst.msk [vmem:[%s9 + $0x150] sm:$0xff] %vm2012, %v1926
  %2056 = vst.msk [vmem:[%s9 + $0x158] sm:$0xff] %vm2012, %v1929
  %2057 = vst.msk [vmem:[%s9 + $0x160] sm:$0xff] %vm2012, %v1934
  %2058 = vst.msk [vmem:[%s9 + $0x168] sm:$0xff] %vm2012, %v1937
  %2059 = vst.msk [vmem:[%s9 + $0x170] sm:$0xff] %vm2012, %v1942
  %2060 = vst.msk [vmem:[%s9 + $0x178] sm:$0xff] %vm2012, %v1945
  %2061 = vst.msk [vmem:[%s9 + $0x180] sm:$0xff] %vm2012, %v1950
  %2062 = vst.msk [vmem:[%s9 + $0x188] sm:$0xff] %vm2012, %v1953
  %2063 = vst.msk [vmem:[%s9 + $0x190] sm:$0xff] %vm2012, %v1958
  %2064 = vst.msk [vmem:[%s9 + $0x198] sm:$0xff] %vm2012, %v1961
  %2065 = vst.msk [vmem:[%s9 + $0x1a0] sm:$0xff] %vm2012, %v1966
  %2066 = vst.msk [vmem:[%s9 + $0x1a8] sm:$0xff] %vm2012, %v1969
  %2067 = vst.msk [vmem:[%s9 + $0x1b0] sm:$0xff] %vm2012, %v1974
  %2068 = vst.msk [vmem:[%s9 + $0x1b8] sm:$0xff] %vm2012, %v1977
  %2069 = vst.msk [vmem:[%s9 + $0x1c0] sm:$0xff] %vm2012, %v1982
  %2070 = vst.msk [vmem:[%s9 + $0x1c8] sm:$0xff] %vm2012, %v1985
  %2071 = vst.msk [vmem:[%s9 + $0x1d0] sm:$0xff] %vm2012, %v1990
  %2072 = vst.msk [vmem:[%s9 + $0x1d8] sm:$0xff] %vm2012, %v1993
  %2073 = vst.msk [vmem:[%s9 + $0x1e0] sm:$0xff] %vm2012, %v1998
  %2074 = vst.msk [vmem:[%s9 + $0x1e8] sm:$0xff] %vm2012, %v2001
  %2075 = vst.msk [vmem:[%s9 + $0x1f0] sm:$0xff] %vm2012, %v2006
  %2076 = vst.msk [vmem:[%s9 + $0x1f8] sm:$0xff] %vm2012, %v2009
  // Predicated region
  $region38: #{tpu_custom_call.1} parent=0 // pred_check
    _
  $region39: #{tpu_custom_call.1} parent=0 // pred_check_branch
    %2078 = sbr.rel (0) target = $region41
  $region40: #{tpu_custom_call.1} parent=0 // pred_region
    _
  $region41: #{tpu_custom_call.1} parent=0 // pred_fallthru
    _
  // Predicated region
  $region42: #{tpu_custom_call.1} parent=0 // pred_check
    _
  $region43: #{tpu_custom_call.1} parent=0 // pred_check_branch
    %2080 = sbr.rel (0) target = $region45
  $region44: #{tpu_custom_call.1} parent=0 // pred_region
    _
  $region45: #{tpu_custom_call.1} parent=0 // pred_fallthru
    _

</llo_original>
